<compile_context>
chip_gen: v6e
topology: v6e:2x2x1
jax: 0.10.0
libtpu: 0.0.40
codegen_flags: <defaults>
</compile_context>

<pallas_src>
import numpy as np
import jax
import jax.numpy as jnp
from jax.experimental import pallas as pl
from jax.experimental.pallas import tpu as pltpu


# ----------------------------------------------------------------------------
# Pallas kernel: fused bottleneck 1x1 conv (BN pre-folded) + bias + ReLU +
# final 1x1 classifier conv (+bias), with the K dimension split into two
# blocks (pyramid priors / raw features) so no concatenated tensor is needed.
# ----------------------------------------------------------------------------
def _psp_head_kernel(xa_ref, xb_ref, w1a_ref, w1b_ref, b1_ref, w2_ref, b2_ref,
                     o_ref):
    # bottleneck: acc = xa @ W1a + xb @ W1b   (bf16 operands, f32 accumulate)
    acc = jnp.dot(xa_ref[...], w1a_ref[...], preferred_element_type=jnp.float32)
    acc = acc + jnp.dot(xb_ref[...], w1b_ref[...],
                        preferred_element_type=jnp.float32)
    # bias (folded BN shift) + ReLU in f32
    y = jnp.maximum(acc + b1_ref[...], 0.0)
    # final classifier into a lane-dense (padded) output
    out = jnp.dot(y.astype(w2_ref.dtype), w2_ref[...],
                  preferred_element_type=jnp.float32) + b2_ref[...]
    o_ref[...] = out.astype(o_ref.dtype)


def psp_bottleneck_final(xa, xb, w1a, w1b, b1, w2, b2, *, tile_rows=512,
                         vmem_limit_bytes=64 * 1024 * 1024):
    """xa: [P, C_a] priors, xb: [P, C_b] feats (both bf16, P % tile_rows == 0).

    Returns [P, n_out_padded] float32 logits (n_out_padded is lane-dense).
    """
    P, C_a = xa.shape
    _, C_b = xb.shape
    C_out = w1a.shape[1]
    n_out = w2.shape[1]
    assert P % tile_rows == 0, "pad P to a multiple of tile_rows in the wrapper"
    grid = (P // tile_rows,)

    def _wspec(shape):
        # Grid-invariant weight / bias blocks: single-buffered to save VMEM.
        return pl.BlockSpec(shape, lambda i: (0, 0),
                            pipeline_mode=pl.Buffered(1))

    return pl.pallas_call(
        _psp_head_kernel,
        out_shape=jax.ShapeDtypeStruct((P, n_out), jnp.float32),
        grid_spec=pltpu.PrefetchScalarGridSpec(
            num_scalar_prefetch=0,
            grid=grid,
            in_specs=[
                pl.BlockSpec((tile_rows, C_a), lambda i: (i, 0)),
                pl.BlockSpec((tile_rows, C_b), lambda i: (i, 0)),
                _wspec((C_a, C_out)),
                _wspec((C_b, C_out)),
                _wspec((1, C_out)),
                _wspec((C_out, n_out)),
                _wspec((1, n_out)),
            ],
            out_specs=pl.BlockSpec((tile_rows, n_out), lambda i: (i, 0)),
        ),
        compiler_params=pltpu.CompilerParams(
            dimension_semantics=("parallel",),
            vmem_limit_bytes=vmem_limit_bytes),
    )(xa, xb, w1a, w1b, b1, w2, b2)


# ----------------------------------------------------------------------------
# Exact matrix forms of AdaptiveAvgPool2d and bilinear upsample.
# TODO(synk): bilinear matrix is align_corners=False (modern F.interpolate
# default); legacy F.upsample in original PSPNet used align_corners=True.
# ----------------------------------------------------------------------------
def adaptive_pool_matrix(in_size, out_size):
    m = np.zeros((out_size, in_size), dtype=np.float32)
    for i in range(out_size):
        start = (i * in_size) // out_size
        end = -(-((i + 1) * in_size) // out_size)  # ceil
        m[i, start:end] = 1.0 / (end - start)
    return m


def bilinear_upsample_matrix(in_size, out_size):
    m = np.zeros((out_size, in_size), dtype=np.float32)
    scale = in_size / out_size
    for i in range(out_size):
        src = max((i + 0.5) * scale - 0.5, 0.0)
        i0 = min(int(np.floor(src)), in_size - 1)
        i1 = min(i0 + 1, in_size - 1)
        frac = src - i0
        m[i, i0] += 1.0 - frac
        m[i, i1] += frac
    return m


# ----------------------------------------------------------------------------
# Full PSPHead forward
# ----------------------------------------------------------------------------
def psp_head_forward(feats_nchw, params, sizes=(1, 2, 3, 6), eps=1e-5,
                     use_kernel=True, tile_rows=512):
    N, C_in, H, W = feats_nchw.shape
    feats = jnp.transpose(feats_nchw, (0, 2, 3, 1))  # NHWC, f32

    # --- pyramid stages: pool -> (1x1 conv with BN folded in) -> ReLU -> up ---
    priors = []
    for s in sizes:
        pool_h = jnp.asarray(adaptive_pool_matrix(H, s))
        pool_w = jnp.asarray(adaptive_pool_matrix(W, s))
        scale_s = params['stage_gamma'][s] * jax.lax.rsqrt(
            params['stage_var'][s] + eps)
        w_fold = params['stage_w'][s] * scale_s[None, :]
        b_fold = params['stage_beta'][s] - params['stage_mean'][s] * scale_s
        pooled = jnp.einsum('ph,qw,nhwc->npqc', pool_h, pool_w, feats)
        y = jnp.maximum(jnp.einsum('npqc,cd->npqd', pooled, w_fold) + b_fold,
                        0.0)
        up_h = jnp.asarray(bilinear_upsample_matrix(s, H))
        up_w = jnp.asarray(bilinear_upsample_matrix(s, W))
        priors.append(jnp.einsum('hp,wq,npqd->nhwd', up_h, up_w, y))

    P = N * H * W
    priors_rows = jnp.concatenate(priors, axis=-1).reshape(P, C_in)  # [P, C_in]
    feats_rows = feats.reshape(P, C_in)                              # [P, C_in]

    # --- fold bottleneck BN into its weights / bias, split along K ---
    scale1 = params['bn1_gamma'] * jax.lax.rsqrt(params['bn1_var'] + eps)
    bias1 = params['bn1_beta'] - params['bn1_mean'] * scale1
    w1 = params['w_bottleneck'] * scale1[None, :]      # [2*C_in, C_out]
    w1a, w1b = w1[:C_in], w1[C_in:]                    # priors part / feats part

    w2 = params['w_final']                             # [C_out, n_classes]
    b2 = params['b_final']
    n_classes = w2.shape[1]

    if use_kernel:
        # lane-dense classifier output: pad classes up to a multiple of 128
        n_pad = ((n_classes + 127) // 128) * 128
        w2_p = jnp.pad(w2, ((0, 0), (0, n_pad - n_classes)))
        b2_p = jnp.pad(b2, (0, n_pad - n_classes))

        # pad rows to a multiple of tile_rows (no hard divisibility assert)
        P_pad = pl.cdiv(P, tile_rows) * tile_rows
        pad_r = P_pad - P
        xa = jnp.pad(priors_rows, ((0, pad_r), (0, 0))).astype(jnp.bfloat16)
        xb = jnp.pad(feats_rows, ((0, pad_r), (0, 0))).astype(jnp.bfloat16)

        out_rows = psp_bottleneck_final(
            xa, xb,
            w1a.astype(jnp.bfloat16), w1b.astype(jnp.bfloat16),
            bias1.reshape(1, -1),                       # f32
            w2_p.astype(jnp.bfloat16), b2_p.reshape(1, -1),  # bf16 / f32
            tile_rows=tile_rows)
        out_rows = out_rows[:P, :n_classes]
    else:  # pure-JAX f32 reference path (module semantics)
        y = jnp.maximum(priors_rows @ w1a + feats_rows @ w1b + bias1, 0.0)
        out_rows = y @ w2 + b2

    out = out_rows.reshape(N, H, W, n_classes)
    return jnp.transpose(out, (0, 3, 1, 2))  # NCHW


# ----------------------------------------------------------------------------
# Deterministic parameter construction (synthetic; shapes from the module)
# ----------------------------------------------------------------------------
def make_params(key, in_features, out_features, n_classes, sizes):
    c4 = in_features // 4
    c_cat = in_features * (len(sizes) // 4 + 1)  # == 2 * in_features
    ks = jax.random.split(key, len(sizes) + 3)
    params = {
        'stage_w': {}, 'stage_gamma': {}, 'stage_beta': {},
        'stage_mean': {}, 'stage_var': {},
    }
    for i, s in enumerate(sizes):
        params['stage_w'][s] = (jax.random.normal(ks[i], (in_features, c4),
                                                  dtype=jnp.float32)
                                / np.sqrt(in_features))
        params['stage_gamma'][s] = jnp.ones((c4,), jnp.float32)
        params['stage_beta'][s] = jnp.zeros((c4,), jnp.float32)
        params['stage_mean'][s] = jnp.zeros((c4,), jnp.float32)
        params['stage_var'][s] = jnp.ones((c4,), jnp.float32)
    params['w_bottleneck'] = (jax.random.normal(ks[-3], (c_cat, out_features),
                                                dtype=jnp.float32)
                              / np.sqrt(c_cat))
    params['bn1_gamma'] = jnp.ones((out_features,), jnp.float32)
    params['bn1_beta'] = jnp.zeros((out_features,), jnp.float32)
    params['bn1_mean'] = jnp.zeros((out_features,), jnp.float32)
    params['bn1_var'] = jnp.ones((out_features,), jnp.float32)
    params['w_final'] = (jax.random.normal(ks[-2], (out_features, n_classes),
                                           dtype=jnp.float32)
                         / np.sqrt(out_features))
    params['b_final'] = 0.1 * jax.random.normal(ks[-1], (n_classes,),
                                                dtype=jnp.float32)
    return params


if __name__ == "__main__":
    # Small shapes consistent with the module (in_features divisible by 4).
    # P = N*H*W = 2048 -> 4 grid steps at tile_rows=512 (exercises row tiling).
    N, C_in, H, W = 2, 64, 32, 32
    out_features, n_classes = 32, 21
    sizes = (1, 2, 3, 6)

    key = jax.random.PRNGKey(0)
    k_x, k_p = jax.random.split(key)
    feats = jax.random.normal(k_x, (N, C_in, H, W), dtype=jnp.float32)
    params = make_params(k_p, C_in, out_features, n_classes, sizes)

    out = psp_head_forward(feats, params, sizes=sizes, use_kernel=True,
                           tile_rows=512)
    out = jax.block_until_ready(out)
    assert out.shape == (N, n_classes, H, W)

    # Sanity check against the pure-JAX f32 path (loose tol: matmul operands
    # are bf16 in the kernel, accumulation/bias/ReLU are f32).
    ref = jax.block_until_ready(
        psp_head_forward(feats, params, sizes=sizes, use_kernel=False))
    np.testing.assert_allclose(np.asarray(out), np.asarray(ref),
                               rtol=5e-2, atol=5e-2)

    print("KERNEL_OK")
</pallas_src>

<mosaic_0001>
module attributes {stable_mosaic.version = 11 : i64} {
  func.func @_psp_head_kernel(%arg0: i32, %arg1: memref<512x64xbf16, #tpu.memory_space<vmem>>, %arg2: memref<512x64xbf16, #tpu.memory_space<vmem>>, %arg3: memref<64x32xbf16, #tpu.memory_space<vmem>>, %arg4: memref<64x32xbf16, #tpu.memory_space<vmem>>, %arg5: memref<1x32xf32, #tpu.memory_space<vmem>>, %arg6: memref<32x128xbf16, #tpu.memory_space<vmem>>, %arg7: memref<1x128xf32, #tpu.memory_space<vmem>>, %arg8: memref<512x128xf32, #tpu.memory_space<vmem>>) attributes {dimension_semantics = [#tpu.dimension_semantics<parallel>], iteration_bounds = array<i64: 4>, scalar_prefetch = 0 : i64, scratch_operands = 0 : i64, tpu.core_type = #tpu.core_type<tc>, window_params = [{transform_indices = @transform_0, window_bounds = array<i64: 512, 64>}, {transform_indices = @transform_1, window_bounds = array<i64: 512, 64>}, {pipeline_mode = #tpu.pipeline_mode<synchronous>, transform_indices = @transform_2, window_bounds = array<i64: 64, 32>}, {pipeline_mode = #tpu.pipeline_mode<synchronous>, transform_indices = @transform_3, window_bounds = array<i64: 64, 32>}, {pipeline_mode = #tpu.pipeline_mode<synchronous>, transform_indices = @transform_4, window_bounds = array<i64: 1, 32>}, {pipeline_mode = #tpu.pipeline_mode<synchronous>, transform_indices = @transform_5, window_bounds = array<i64: 32, 128>}, {pipeline_mode = #tpu.pipeline_mode<synchronous>, transform_indices = @transform_6, window_bounds = array<i64: 1, 128>}, {transform_indices = @transform_7, window_bounds = array<i64: 512, 128>}]} {
    %c0 = arith.constant 0 : index
    %c0_0 = arith.constant 0 : index
    %0 = vector.load %arg1[%c0, %c0_0] : memref<512x64xbf16, #tpu.memory_space<vmem>>, vector<512x64xbf16>
    %c0_1 = arith.constant 0 : index
    %c0_2 = arith.constant 0 : index
    %1 = vector.load %arg3[%c0_1, %c0_2] : memref<64x32xbf16, #tpu.memory_space<vmem>>, vector<64x32xbf16>
    %cst = arith.constant dense<0.000000e+00> : vector<512x32xf32>
    %2 = tpu.matmul %0, %1, %cst {dimension_numbers = #tpu.dot_dimension_numbers<[1], [0], [0], [1], [0, 0, 1, 1], [], []>} : vector<512x64xbf16>, vector<64x32xbf16>, vector<512x32xf32> -> vector<512x32xf32>
    %c0_3 = arith.constant 0 : index
    %c0_4 = arith.constant 0 : index
    %3 = vector.load %arg2[%c0_3, %c0_4] : memref<512x64xbf16, #tpu.memory_space<vmem>>, vector<512x64xbf16>
    %c0_5 = arith.constant 0 : index
    %c0_6 = arith.constant 0 : index
    %4 = vector.load %arg4[%c0_5, %c0_6] : memref<64x32xbf16, #tpu.memory_space<vmem>>, vector<64x32xbf16>
    %cst_7 = arith.constant dense<0.000000e+00> : vector<512x32xf32>
    %5 = tpu.matmul %3, %4, %cst_7 {dimension_numbers = #tpu.dot_dimension_numbers<[1], [0], [0], [1], [0, 0, 1, 1], [], []>} : vector<512x64xbf16>, vector<64x32xbf16>, vector<512x32xf32> -> vector<512x32xf32>
    %6 = arith.addf %2, %5 : vector<512x32xf32>
    %c0_8 = arith.constant 0 : index
    %c0_9 = arith.constant 0 : index
    %7 = vector.load %arg5[%c0_8, %c0_9] : memref<1x32xf32, #tpu.memory_space<vmem>>, vector<1x32xf32>
    %8 = vector.broadcast %7 : vector<1x32xf32> to vector<512x32xf32>
    %9 = arith.addf %6, %8 : vector<512x32xf32>
    %cst_10 = arith.constant 0.000000e+00 : f32
    %10 = vector.broadcast %cst_10 : f32 to vector<512x32xf32>
    %11 = arith.maximumf %9, %10 : vector<512x32xf32>
    %12 = arith.truncf %11 : vector<512x32xf32> to vector<512x32xbf16>
    %c0_11 = arith.constant 0 : index
    %c0_12 = arith.constant 0 : index
    %13 = vector.load %arg6[%c0_11, %c0_12] : memref<32x128xbf16, #tpu.memory_space<vmem>>, vector<32x128xbf16>
    %cst_13 = arith.constant dense<0.000000e+00> : vector<512x128xf32>
    %14 = tpu.matmul %12, %13, %cst_13 {dimension_numbers = #tpu.dot_dimension_numbers<[1], [0], [0], [1], [0, 0, 1, 1], [], []>} : vector<512x32xbf16>, vector<32x128xbf16>, vector<512x128xf32> -> vector<512x128xf32>
    %c0_14 = arith.constant 0 : index
    %c0_15 = arith.constant 0 : index
    %15 = vector.load %arg7[%c0_14, %c0_15] : memref<1x128xf32, #tpu.memory_space<vmem>>, vector<1x128xf32>
    %16 = vector.broadcast %15 : vector<1x128xf32> to vector<512x128xf32>
    %17 = arith.addf %14, %16 : vector<512x128xf32>
    %c0_16 = arith.constant 0 : index
    %c0_17 = arith.constant 0 : index
    %18 = vector.load %arg8[%c0_16, %c0_17] : memref<512x128xf32, #tpu.memory_space<vmem>>, vector<512x128xf32>
    tpu.vector_store %arg8[%c0_16, %c0_17], %17 {strides = array<i32>} : memref<512x128xf32, #tpu.memory_space<vmem>>, vector<512x128xf32>,
    return
  }
  func.func @transform_0(%arg0: i32) -> (i32, i32) {
    %c0_i32 = arith.constant 0 : i32
    %c0_i32_0 = arith.constant 0 : i32
    return %arg0, %c0_i32 : i32, i32
  }
  func.func @transform_1(%arg0: i32) -> (i32, i32) {
    %c0_i32 = arith.constant 0 : i32
    %c0_i32_0 = arith.constant 0 : i32
    return %arg0, %c0_i32 : i32, i32
  }
  func.func @transform_2(%arg0: i32) -> (i32, i32) {
    %c0_i32 = arith.constant 0 : i32
    %c0_i32_0 = arith.constant 0 : i32
    %c0_i32_1 = arith.constant 0 : i32
    return %c0_i32, %c0_i32_0 : i32, i32
  }
  func.func @transform_3(%arg0: i32) -> (i32, i32) {
    %c0_i32 = arith.constant 0 : i32
    %c0_i32_0 = arith.constant 0 : i32
    %c0_i32_1 = arith.constant 0 : i32
    return %c0_i32, %c0_i32_0 : i32, i32
  }
  func.func @transform_4(%arg0: i32) -> (i32, i32) {
    %c0_i32 = arith.constant 0 : i32
    %c0_i32_0 = arith.constant 0 : i32
    %c0_i32_1 = arith.constant 0 : i32
    return %c0_i32, %c0_i32_0 : i32, i32
  }
  func.func @transform_5(%arg0: i32) -> (i32, i32) {
    %c0_i32 = arith.constant 0 : i32
    %c0_i32_0 = arith.constant 0 : i32
    %c0_i32_1 = arith.constant 0 : i32
    return %c0_i32, %c0_i32_0 : i32, i32
  }
  func.func @transform_6(%arg0: i32) -> (i32, i32) {
    %c0_i32 = arith.constant 0 : i32
    %c0_i32_0 = arith.constant 0 : i32
    %c0_i32_1 = arith.constant 0 : i32
    return %c0_i32, %c0_i32_0 : i32, i32
  }
  func.func @transform_7(%arg0: i32) -> (i32, i32) {
    %c0_i32 = arith.constant 0 : i32
    %c0_i32_0 = arith.constant 0 : i32
    return %arg0, %c0_i32 : i32, i32
  }
}

</mosaic_0001>

<llo_original>
// kernel: tpu_custom_call.1
$region0: #{tpu_custom_call.1}
  #allocation0 [shape = 'u32[]', space=smem, size = 0x4, offset = 0x4, fixed_abs, tag = 'smem constant byte address 0x4 - core index']
  #allocation1 [shape = 'u32[144,128]{1,0:T(1,128)}', space=vmem, size = 0x12000, scoped, tag = 'internal scratch']
  %s0 = inlined_call_operand.vmem [shape: bf16[2048,64], index: 0, kind: input, shape index: {}]
  %s1 = inlined_call_operand.vmem [shape: bf16[2048,64], index: 1, kind: input, shape index: {}]
  %s2 = inlined_call_operand.vmem [shape: bf16[64,32], index: 2, kind: input, shape index: {}]
  %s3 = inlined_call_operand.vmem [shape: bf16[64,32], index: 3, kind: input, shape index: {}]
  %s4 = inlined_call_operand.vmem [shape: f32[1,32], index: 4, kind: input, shape index: {}]
  %s5 = inlined_call_operand.vmem [shape: bf16[32,128], index: 5, kind: input, shape index: {}]
  %s6 = inlined_call_operand.vmem [shape: f32[1,128], index: 6, kind: input, shape index: {}]
  %s7 = inlined_call_operand.hbm [shape: f32[2048,128], index: 7, kind: output, shape index: {}]
  %s8 = sld [smem:[#allocation0]]
  $region61: #{tpu_custom_call.1} parent=0
    _
  %s10 = ssub.s32 1, %s8
  %s11 = scalar_select 0, %s10, %s8
  $region1: #{tpu_custom_call.1} parent=0
    #allocation2 [shape = 'u8[524288]{0}', space=vmem, size = 0x80000, scoped, tag = 'output window, operand 0']
    #allocation3 [shape = 's32[2]{0}', space=sflag, size = 0x8, scoped, tag = 'scoped memory for tpu_custom_call.1']
    %12 = vsyncpa [#allocation3], 0
    %s13 = scalar_lea.sflag [#allocation3], 1
    %14 = vsyncpa %s13, 0
    loop: start=0, step=1, limit=6
    $region2: #{tpu_custom_call.1} parent=1 // loop_pre_header
      _
    $region3: #{tpu_custom_call.1} parent=1 // loop_header
      %s16 = sphi 0, %s20
      %p17 = scmp.ge.s32.totalorder %s16, 6
      %s26 = sphi 0, %s28
      %s29 = sphi 0, %s26
      %s30 = sphi 0, %s29
      %s46 = sphi 0, %s30
      %s52 = sphi 0, %s54
      %s55 = sphi 0, %s52
      %s56 = sphi 0, %s55
      %s72 = sphi 0, %s56
      %s76 = sphi 0, %s76
      %s78 = sphi 0, %s76
      %s79 = sphi 0, %s78
      %s93 = sphi 0, %s79
      %s97 = sphi 0, %s97
      %s99 = sphi 0, %s97
      %s100 = sphi 0, %s99
      %s114 = sphi 0, %s100
      %s118 = sphi 0, %s118
      %s120 = sphi 0, %s118
      %s121 = sphi 0, %s120
      %s135 = sphi 0, %s121
      %s139 = sphi 0, %s139
      %s141 = sphi 0, %s139
      %s142 = sphi 0, %s141
      %s156 = sphi 0, %s142
      %s160 = sphi 0, %s160
      %s162 = sphi 0, %s160
      %s163 = sphi 0, %s162
      %s177 = sphi 0, %s163
      %s183 = sphi 0, %s185
      %s186 = sphi 0, %s183
      %s187 = sphi 0, %s186
      %s203 = sphi 0, %s187
    $region4: #{tpu_custom_call.1} parent=1 // loop_header_branch
      %19 = sbr.rel (%p17) target = $region8
    $region5: #{tpu_custom_call.1} parent=1 // loop_body
      %s21 = ssub.s32 %s16, 1
      %s22 = ssub.s32 %s16, 2
      %s23 = sadd.s32 %s16, 1
      %s24 = ssub.s32 %s16, %s23
      %p25 = scmp.eq.s32.totalorder %s24, 0
      %s27 = sadd.s32 %s26, 1
      %s28 = scalar_select %p25, %s26, %s27
      %p31 = pneg %p25
      %p32 = scmp.eq.s32.totalorder %s16, 3
      %p33 = por %p31, %p32
      %p34 = scmp.ne.s32.totalorder %s26, %s29
      %p35 = scmp.eq.s32.totalorder %s16, 0
      %p36 = por %p34, %p35
      %p37 = scmp.ne.s32.totalorder %s26, %s29
      %p38 = scmp.eq.s32.totalorder %s21, 3
      %p39 = por %p37, %p38
      %p40 = scmp.ne.s32.totalorder %s29, %s30
      %p41 = scmp.eq.s32.totalorder %s21, 0
      %p42 = por %p40, %p41
      %p43 = scmp.ne.s32.totalorder %s29, %s30
      %p44 = scmp.eq.s32.totalorder %s22, 3
      %p45 = por %p43, %p44
      %p47 = scmp.ne.s32.totalorder %s30, %s46
      %p48 = scmp.eq.s32.totalorder %s22, 0
      %p49 = por %p47, %p48
      %s50 = ssub.s32 %s16, %s23
      %p51 = scmp.eq.s32.totalorder %s50, 0
      %s53 = sadd.s32 %s52, 1
      %s54 = scalar_select %p51, %s52, %s53
      %p57 = pneg %p51
      %p58 = scmp.eq.s32.totalorder %s16, 3
      %p59 = por %p57, %p58
      %p60 = scmp.ne.s32.totalorder %s52, %s55
      %p61 = scmp.eq.s32.totalorder %s16, 0
      %p62 = por %p60, %p61
      %p63 = scmp.ne.s32.totalorder %s52, %s55
      %p64 = scmp.eq.s32.totalorder %s21, 3
      %p65 = por %p63, %p64
      %p66 = scmp.ne.s32.totalorder %s55, %s56
      %p67 = scmp.eq.s32.totalorder %s21, 0
      %p68 = por %p66, %p67
      %p69 = scmp.ne.s32.totalorder %s55, %s56
      %p70 = scmp.eq.s32.totalorder %s22, 3
      %p71 = por %p69, %p70
      %p73 = scmp.ne.s32.totalorder %s56, %s72
      %p74 = scmp.eq.s32.totalorder %s22, 0
      %p75 = por %p73, %p74
      %s77 = sadd.s32 %s76, 1
      %p80 = scmp.eq.s32.totalorder %s16, 3
      %p81 = scmp.ne.s32.totalorder %s76, %s78
      %p82 = scmp.eq.s32.totalorder %s16, 0
      %p83 = por %p81, %p82
      %p84 = scmp.ne.s32.totalorder %s76, %s78
      %p85 = scmp.eq.s32.totalorder %s21, 3
      %p86 = por %p84, %p85
      %p87 = scmp.ne.s32.totalorder %s78, %s79
      %p88 = scmp.eq.s32.totalorder %s21, 0
      %p89 = por %p87, %p88
      %p90 = scmp.ne.s32.totalorder %s78, %s79
      %p91 = scmp.eq.s32.totalorder %s22, 3
      %p92 = por %p90, %p91
      %p94 = scmp.ne.s32.totalorder %s79, %s93
      %p95 = scmp.eq.s32.totalorder %s22, 0
      %p96 = por %p94, %p95
      %s98 = sadd.s32 %s97, 1
      %p101 = scmp.eq.s32.totalorder %s16, 3
      %p102 = scmp.ne.s32.totalorder %s97, %s99
      %p103 = scmp.eq.s32.totalorder %s16, 0
      %p104 = por %p102, %p103
      %p105 = scmp.ne.s32.totalorder %s97, %s99
      %p106 = scmp.eq.s32.totalorder %s21, 3
      %p107 = por %p105, %p106
      %p108 = scmp.ne.s32.totalorder %s99, %s100
      %p109 = scmp.eq.s32.totalorder %s21, 0
      %p110 = por %p108, %p109
      %p111 = scmp.ne.s32.totalorder %s99, %s100
      %p112 = scmp.eq.s32.totalorder %s22, 3
      %p113 = por %p111, %p112
      %p115 = scmp.ne.s32.totalorder %s100, %s114
      %p116 = scmp.eq.s32.totalorder %s22, 0
      %p117 = por %p115, %p116
      %s119 = sadd.s32 %s118, 1
      %p122 = scmp.eq.s32.totalorder %s16, 3
      %p123 = scmp.ne.s32.totalorder %s118, %s120
      %p124 = scmp.eq.s32.totalorder %s16, 0
      %p125 = por %p123, %p124
      %p126 = scmp.ne.s32.totalorder %s118, %s120
      %p127 = scmp.eq.s32.totalorder %s21, 3
      %p128 = por %p126, %p127
      %p129 = scmp.ne.s32.totalorder %s120, %s121
      %p130 = scmp.eq.s32.totalorder %s21, 0
      %p131 = por %p129, %p130
      %p132 = scmp.ne.s32.totalorder %s120, %s121
      %p133 = scmp.eq.s32.totalorder %s22, 3
      %p134 = por %p132, %p133
      %p136 = scmp.ne.s32.totalorder %s121, %s135
      %p137 = scmp.eq.s32.totalorder %s22, 0
      %p138 = por %p136, %p137
      %s140 = sadd.s32 %s139, 1
      %p143 = scmp.eq.s32.totalorder %s16, 3
      %p144 = scmp.ne.s32.totalorder %s139, %s141
      %p145 = scmp.eq.s32.totalorder %s16, 0
      %p146 = por %p144, %p145
      %p147 = scmp.ne.s32.totalorder %s139, %s141
      %p148 = scmp.eq.s32.totalorder %s21, 3
      %p149 = por %p147, %p148
      %p150 = scmp.ne.s32.totalorder %s141, %s142
      %p151 = scmp.eq.s32.totalorder %s21, 0
      %p152 = por %p150, %p151
      %p153 = scmp.ne.s32.totalorder %s141, %s142
      %p154 = scmp.eq.s32.totalorder %s22, 3
      %p155 = por %p153, %p154
      %p157 = scmp.ne.s32.totalorder %s142, %s156
      %p158 = scmp.eq.s32.totalorder %s22, 0
      %p159 = por %p157, %p158
      %s161 = sadd.s32 %s160, 1
      %p164 = scmp.eq.s32.totalorder %s16, 3
      %p165 = scmp.ne.s32.totalorder %s160, %s162
      %p166 = scmp.eq.s32.totalorder %s16, 0
      %p167 = por %p165, %p166
      %p168 = scmp.ne.s32.totalorder %s160, %s162
      %p169 = scmp.eq.s32.totalorder %s21, 3
      %p170 = por %p168, %p169
      %p171 = scmp.ne.s32.totalorder %s162, %s163
      %p172 = scmp.eq.s32.totalorder %s21, 0
      %p173 = por %p171, %p172
      %p174 = scmp.ne.s32.totalorder %s162, %s163
      %p175 = scmp.eq.s32.totalorder %s22, 3
      %p176 = por %p174, %p175
      %p178 = scmp.ne.s32.totalorder %s163, %s177
      %p179 = scmp.eq.s32.totalorder %s22, 0
      %p180 = por %p178, %p179
      %s181 = ssub.s32 %s16, %s23
      %p182 = scmp.eq.s32.totalorder %s181, 0
      %s184 = sadd.s32 %s183, 1
      %s185 = scalar_select %p182, %s183, %s184
      %p188 = pneg %p182
      %p189 = scmp.eq.s32.totalorder %s16, 3
      %p190 = por %p188, %p189
      %p191 = scmp.ne.s32.totalorder %s183, %s186
      %p192 = scmp.eq.s32.totalorder %s16, 0
      %p193 = por %p191, %p192
      %p194 = scmp.ne.s32.totalorder %s183, %s186
      %p195 = scmp.eq.s32.totalorder %s21, 3
      %p196 = por %p194, %p195
      %p197 = scmp.ne.s32.totalorder %s186, %s187
      %p198 = scmp.eq.s32.totalorder %s21, 0
      %p199 = por %p197, %p198
      %p200 = scmp.ne.s32.totalorder %s186, %s187
      %p201 = scmp.eq.s32.totalorder %s22, 3
      %p202 = por %p200, %p201
      %p204 = scmp.ne.s32.totalorder %s187, %s203
      %p205 = scmp.eq.s32.totalorder %s22, 0
      %p206 = por %p204, %p205
      %p207 = scmp.le.s32.totalorder 1, %s16
      %p208 = scmp.lt.s32.totalorder %s16, 5
      %p209 = pnand %p207, %p208
      %p210 = pneg %p209
      // Predicated region
      $region9: #{tpu_custom_call.1} parent=5 // pred_check
        _
      $region10: #{tpu_custom_call.1} parent=5 // pred_check_branch
        %212 = sbr.rel (%p209) target = $region12
      $region11: #{tpu_custom_call.1} parent=5 // pred_region
        %s213 = ssub.s32 %s16, 1
        // Predicated region
        $region13: #{tpu_custom_call.1} parent=11 // pred_check
          %p214 = pneg %p89
        $region14: #{tpu_custom_call.1} parent=11 // pred_check_branch
          %216 = sbr.rel (%p214) target = $region16
        $region15: #{tpu_custom_call.1} parent=11 // pred_region
          _
        $region16: #{tpu_custom_call.1} parent=11 // pred_fallthru
          _
        // Predicated region
        $region17: #{tpu_custom_call.1} parent=11 // pred_check
          %p217 = pneg %p110
        $region18: #{tpu_custom_call.1} parent=11 // pred_check_branch
          %219 = sbr.rel (%p217) target = $region20
        $region19: #{tpu_custom_call.1} parent=11 // pred_region
          _
        $region20: #{tpu_custom_call.1} parent=11 // pred_fallthru
          _
        // Predicated region
        $region21: #{tpu_custom_call.1} parent=11 // pred_check
          %p220 = pneg %p131
        $region22: #{tpu_custom_call.1} parent=11 // pred_check_branch
          %222 = sbr.rel (%p220) target = $region24
        $region23: #{tpu_custom_call.1} parent=11 // pred_region
          _
        $region24: #{tpu_custom_call.1} parent=11 // pred_fallthru
          _
        // Predicated region
        $region25: #{tpu_custom_call.1} parent=11 // pred_check
          %p223 = pneg %p152
        $region26: #{tpu_custom_call.1} parent=11 // pred_check_branch
          %225 = sbr.rel (%p223) target = $region28
        $region27: #{tpu_custom_call.1} parent=11 // pred_region
          _
        $region28: #{tpu_custom_call.1} parent=11 // pred_fallthru
          _
        // Predicated region
        $region29: #{tpu_custom_call.1} parent=11 // pred_check
          %p226 = pneg %p173
        $region30: #{tpu_custom_call.1} parent=11 // pred_check_branch
          %228 = sbr.rel (%p226) target = $region32
        $region31: #{tpu_custom_call.1} parent=11 // pred_region
          _
        $region32: #{tpu_custom_call.1} parent=11 // pred_fallthru
          _
      $region12: #{tpu_custom_call.1} parent=5 // pred_fallthru
        _
      %p229 = scmp.lt.s32.totalorder %s16, 4
      // Predicated region
      $region33: #{tpu_custom_call.1} parent=5 // pred_check
        %p230 = pneg %p229
      $region34: #{tpu_custom_call.1} parent=5 // pred_check_branch
        %232 = sbr.rel (%p230) target = $region36
      $region35: #{tpu_custom_call.1} parent=5 // pred_region
        // Predicated region
        $region37: #{tpu_custom_call.1} parent=35 // pred_check
          %p233 = pneg %p36
        $region38: #{tpu_custom_call.1} parent=35 // pred_check_branch
          %235 = sbr.rel (%p233) target = $region40
        $region39: #{tpu_custom_call.1} parent=35 // pred_region
          %s236 = smul.u32 64, %s16
          %p237 = scmp.lt.s32.totalorder %s236, 255
          %s238 = scalar_select %p237, %s236, 255
          %s239 = smul.addr %s238, 4
          %s240 = scalar_lea.vmem %s0, %s239
          %s241 = smul.u32 64, %s16
        $region40: #{tpu_custom_call.1} parent=35 // pred_fallthru
          _
        // Predicated region
        $region41: #{tpu_custom_call.1} parent=35 // pred_check
          %p242 = pneg %p62
        $region42: #{tpu_custom_call.1} parent=35 // pred_check_branch
          %244 = sbr.rel (%p242) target = $region44
        $region43: #{tpu_custom_call.1} parent=35 // pred_region
          %s245 = smul.u32 64, %s16
          %p246 = scmp.lt.s32.totalorder %s245, 255
          %s247 = scalar_select %p246, %s245, 255
          %s248 = smul.addr %s247, 4
          %s249 = scalar_lea.vmem %s1, %s248
          %s250 = smul.u32 64, %s16
        $region44: #{tpu_custom_call.1} parent=35 // pred_fallthru
          _
      $region36: #{tpu_custom_call.1} parent=5 // pred_fallthru
        _
      %p251 = scmp.le.s32.totalorder 1, %s16
      %p252 = scmp.lt.s32.totalorder %s16, 5
      %p253 = pnand %p251, %p252
      %p254 = pneg %p253
      // Predicated region
      $region45: #{tpu_custom_call.1} parent=5 // pred_check
        _
      $region46: #{tpu_custom_call.1} parent=5 // pred_check_branch
        %256 = sbr.rel (%p253) target = $region48
      $region47: #{tpu_custom_call.1} parent=5 // pred_region
        %s257 = ssub.s32 %s16, 1
        %s258 = smul.u32 64, %s21
        %p259 = scmp.lt.s32.totalorder %s258, 255
        %s260 = scalar_select %p259, %s258, 255
        %s261 = smul.addr %s260, 4
        %s262 = scalar_lea.vmem %s0, %s261
        %p263 = pneg %p42
        %p264 = pneg %p39
        %s265 = smul.u32 64, %s21
        %p266 = scmp.lt.s32.totalorder %s265, 255
        %s267 = scalar_select %p266, %s265, 255
        %s268 = smul.addr %s267, 4
        %s269 = scalar_lea.vmem %s1, %s268
        %p270 = pneg %p68
        %p271 = pneg %p65
        %p272 = pneg %p89
        %p273 = pneg %p86
        %p274 = pneg %p110
        %p275 = pneg %p107
        %p276 = pneg %p131
        %p277 = pneg %p128
        %p278 = pneg %p152
        %p279 = pneg %p149
        %p280 = pneg %p173
        %p281 = pneg %p170
        %p282 = pneg %p199
        %p283 = pneg %p196
        %s284 = sand.u32 %s186, 1
        %s285 = scalar_lea.sflag [#allocation3], %s284
        %s286 = sand.u32 %s186, 1
        %s287 = smul.addr %s286, 512
        %s288 = scalar_lea.vmem [#allocation2], %s287
        %s289 = smul.u32 64, %s21
        %p290 = scmp.lt.s32.totalorder %s289, 255
        %s291 = scalar_select %p290, %s289, 255
        %s292 = smul.addr %s291, 4
        %s293 = scalar_lea.vmem %s0, %s292
        %s294 = smul.u32 64, %s21
        %s295 = smul.u32 64, %s21
        %p296 = scmp.lt.s32.totalorder %s295, 255
        %s297 = scalar_select %p296, %s295, 255
        %s298 = smul.addr %s297, 4
        %s299 = scalar_lea.vmem %s1, %s298
        %s300 = smul.u32 64, %s21
        %s301 = smul.u32 64, %s21
        %v303 = vld [vmem:[%s293] sm:$0xf]
        %v304 = vld [vmem:[%s293 + $0x4] sm:$0xf]
        %v305 = vld [vmem:[%s293 + $0x8] sm:$0xf]
        %v306 = vld [vmem:[%s293 + $0xc] sm:$0xf]
        %v307 = vld [vmem:[%s293 + $0x10] sm:$0xf]
        %v308 = vld [vmem:[%s293 + $0x14] sm:$0xf]
        %v309 = vld [vmem:[%s293 + $0x18] sm:$0xf]
        %v310 = vld [vmem:[%s293 + $0x1c] sm:$0xf]
        %v311 = vld [vmem:[%s293 + $0x20] sm:$0xf]
        %v312 = vld [vmem:[%s293 + $0x24] sm:$0xf]
        %v313 = vld [vmem:[%s293 + $0x28] sm:$0xf]
        %v314 = vld [vmem:[%s293 + $0x2c] sm:$0xf]
        %v315 = vld [vmem:[%s293 + $0x30] sm:$0xf]
        %v316 = vld [vmem:[%s293 + $0x34] sm:$0xf]
        %v317 = vld [vmem:[%s293 + $0x38] sm:$0xf]
        %v318 = vld [vmem:[%s293 + $0x3c] sm:$0xf]
        %v319 = vld [vmem:[%s293 + $0x40] sm:$0xf]
        %v320 = vld [vmem:[%s293 + $0x44] sm:$0xf]
        %v321 = vld [vmem:[%s293 + $0x48] sm:$0xf]
        %v322 = vld [vmem:[%s293 + $0x4c] sm:$0xf]
        %v323 = vld [vmem:[%s293 + $0x50] sm:$0xf]
        %v324 = vld [vmem:[%s293 + $0x54] sm:$0xf]
        %v325 = vld [vmem:[%s293 + $0x58] sm:$0xf]
        %v326 = vld [vmem:[%s293 + $0x5c] sm:$0xf]
        %v327 = vld [vmem:[%s293 + $0x60] sm:$0xf]
        %v328 = vld [vmem:[%s293 + $0x64] sm:$0xf]
        %v329 = vld [vmem:[%s293 + $0x68] sm:$0xf]
        %v330 = vld [vmem:[%s293 + $0x6c] sm:$0xf]
        %v331 = vld [vmem:[%s293 + $0x70] sm:$0xf]
        %v332 = vld [vmem:[%s293 + $0x74] sm:$0xf]
        %v333 = vld [vmem:[%s293 + $0x78] sm:$0xf]
        %v334 = vld [vmem:[%s293 + $0x7c] sm:$0xf]
        %v335 = vld [vmem:[%s293 + $0x80] sm:$0xf]
        %v336 = vld [vmem:[%s293 + $0x84] sm:$0xf]
        %v337 = vld [vmem:[%s293 + $0x88] sm:$0xf]
        %v338 = vld [vmem:[%s293 + $0x8c] sm:$0xf]
        %v339 = vld [vmem:[%s293 + $0x90] sm:$0xf]
        %v340 = vld [vmem:[%s293 + $0x94] sm:$0xf]
        %v341 = vld [vmem:[%s293 + $0x98] sm:$0xf]
        %v342 = vld [vmem:[%s293 + $0x9c] sm:$0xf]
        %v343 = vld [vmem:[%s293 + $0xa0] sm:$0xf]
        %v344 = vld [vmem:[%s293 + $0xa4] sm:$0xf]
        %v345 = vld [vmem:[%s293 + $0xa8] sm:$0xf]
        %v346 = vld [vmem:[%s293 + $0xac] sm:$0xf]
        %v347 = vld [vmem:[%s293 + $0xb0] sm:$0xf]
        %v348 = vld [vmem:[%s293 + $0xb4] sm:$0xf]
        %v349 = vld [vmem:[%s293 + $0xb8] sm:$0xf]
        %v350 = vld [vmem:[%s293 + $0xbc] sm:$0xf]
        %v351 = vld [vmem:[%s293 + $0xc0] sm:$0xf]
        %v352 = vld [vmem:[%s293 + $0xc4] sm:$0xf]
        %v353 = vld [vmem:[%s293 + $0xc8] sm:$0xf]
        %v354 = vld [vmem:[%s293 + $0xcc] sm:$0xf]
        %v355 = vld [vmem:[%s293 + $0xd0] sm:$0xf]
        %v356 = vld [vmem:[%s293 + $0xd4] sm:$0xf]
        %v357 = vld [vmem:[%s293 + $0xd8] sm:$0xf]
        %v358 = vld [vmem:[%s293 + $0xdc] sm:$0xf]
        %v359 = vld [vmem:[%s293 + $0xe0] sm:$0xf]
        %v360 = vld [vmem:[%s293 + $0xe4] sm:$0xf]
        %v361 = vld [vmem:[%s293 + $0xe8] sm:$0xf]
        %v362 = vld [vmem:[%s293 + $0xec] sm:$0xf]
        %v363 = vld [vmem:[%s293 + $0xf0] sm:$0xf]
        %v364 = vld [vmem:[%s293 + $0xf4] sm:$0xf]
        %v365 = vld [vmem:[%s293 + $0xf8] sm:$0xf]
        %v366 = vld [vmem:[%s293 + $0xfc] sm:$0xf]
        %v367 = vld [vmem:[%s2] sm:$0xf]
        %v368 = vld [vmem:[%s2 + $0x4] sm:$0xf]
        %v369 = vld [vmem:[%s2 + $0x8] sm:$0xf]
        %v370 = vld [vmem:[%s2 + $0xc] sm:$0xf]
        %v371 = vld [vmem:[%s2 + $0x10] sm:$0xf]
        %v372 = vld [vmem:[%s2 + $0x14] sm:$0xf]
        %v373 = vld [vmem:[%s2 + $0x18] sm:$0xf]
        %v374 = vld [vmem:[%s2 + $0x1c] sm:$0xf]
        %v375 = vld [vmem:[%s299] sm:$0xf]
        %v376 = vld [vmem:[%s299 + $0x4] sm:$0xf]
        %v377 = vld [vmem:[%s299 + $0x8] sm:$0xf]
        %v378 = vld [vmem:[%s299 + $0xc] sm:$0xf]
        %v379 = vld [vmem:[%s299 + $0x10] sm:$0xf]
        %v380 = vld [vmem:[%s299 + $0x14] sm:$0xf]
        %v381 = vld [vmem:[%s299 + $0x18] sm:$0xf]
        %v382 = vld [vmem:[%s299 + $0x1c] sm:$0xf]
        %v383 = vld [vmem:[%s299 + $0x20] sm:$0xf]
        %v384 = vld [vmem:[%s299 + $0x24] sm:$0xf]
        %v385 = vld [vmem:[%s299 + $0x28] sm:$0xf]
        %v386 = vld [vmem:[%s299 + $0x2c] sm:$0xf]
        %v387 = vld [vmem:[%s299 + $0x30] sm:$0xf]
        %v388 = vld [vmem:[%s299 + $0x34] sm:$0xf]
        %v389 = vld [vmem:[%s299 + $0x38] sm:$0xf]
        %v390 = vld [vmem:[%s299 + $0x3c] sm:$0xf]
        %v391 = vld [vmem:[%s299 + $0x40] sm:$0xf]
        %v392 = vld [vmem:[%s299 + $0x44] sm:$0xf]
        %v393 = vld [vmem:[%s299 + $0x48] sm:$0xf]
        %v394 = vld [vmem:[%s299 + $0x4c] sm:$0xf]
        %v395 = vld [vmem:[%s299 + $0x50] sm:$0xf]
        %v396 = vld [vmem:[%s299 + $0x54] sm:$0xf]
        %v397 = vld [vmem:[%s299 + $0x58] sm:$0xf]
        %v398 = vld [vmem:[%s299 + $0x5c] sm:$0xf]
        %v399 = vld [vmem:[%s299 + $0x60] sm:$0xf]
        %v400 = vld [vmem:[%s299 + $0x64] sm:$0xf]
        %v401 = vld [vmem:[%s299 + $0x68] sm:$0xf]
        %v402 = vld [vmem:[%s299 + $0x6c] sm:$0xf]
        %v403 = vld [vmem:[%s299 + $0x70] sm:$0xf]
        %v404 = vld [vmem:[%s299 + $0x74] sm:$0xf]
        %v405 = vld [vmem:[%s299 + $0x78] sm:$0xf]
        %v406 = vld [vmem:[%s299 + $0x7c] sm:$0xf]
        %v407 = vld [vmem:[%s299 + $0x80] sm:$0xf]
        %v408 = vld [vmem:[%s299 + $0x84] sm:$0xf]
        %v409 = vld [vmem:[%s299 + $0x88] sm:$0xf]
        %v410 = vld [vmem:[%s299 + $0x8c] sm:$0xf]
        %v411 = vld [vmem:[%s299 + $0x90] sm:$0xf]
        %v412 = vld [vmem:[%s299 + $0x94] sm:$0xf]
        %v413 = vld [vmem:[%s299 + $0x98] sm:$0xf]
        %v414 = vld [vmem:[%s299 + $0x9c] sm:$0xf]
        %v415 = vld [vmem:[%s299 + $0xa0] sm:$0xf]
        %v416 = vld [vmem:[%s299 + $0xa4] sm:$0xf]
        %v417 = vld [vmem:[%s299 + $0xa8] sm:$0xf]
        %v418 = vld [vmem:[%s299 + $0xac] sm:$0xf]
        %v419 = vld [vmem:[%s299 + $0xb0] sm:$0xf]
        %v420 = vld [vmem:[%s299 + $0xb4] sm:$0xf]
        %v421 = vld [vmem:[%s299 + $0xb8] sm:$0xf]
        %v422 = vld [vmem:[%s299 + $0xbc] sm:$0xf]
        %v423 = vld [vmem:[%s299 + $0xc0] sm:$0xf]
        %v424 = vld [vmem:[%s299 + $0xc4] sm:$0xf]
        %v425 = vld [vmem:[%s299 + $0xc8] sm:$0xf]
        %v426 = vld [vmem:[%s299 + $0xcc] sm:$0xf]
        %v427 = vld [vmem:[%s299 + $0xd0] sm:$0xf]
        %v428 = vld [vmem:[%s299 + $0xd4] sm:$0xf]
        %v429 = vld [vmem:[%s299 + $0xd8] sm:$0xf]
        %v430 = vld [vmem:[%s299 + $0xdc] sm:$0xf]
        %v431 = vld [vmem:[%s299 + $0xe0] sm:$0xf]
        %v432 = vld [vmem:[%s299 + $0xe4] sm:$0xf]
        %v433 = vld [vmem:[%s299 + $0xe8] sm:$0xf]
        %v434 = vld [vmem:[%s299 + $0xec] sm:$0xf]
        %v435 = vld [vmem:[%s299 + $0xf0] sm:$0xf]
        %v436 = vld [vmem:[%s299 + $0xf4] sm:$0xf]
        %v437 = vld [vmem:[%s299 + $0xf8] sm:$0xf]
        %v438 = vld [vmem:[%s299 + $0xfc] sm:$0xf]
        %v439 = vld [vmem:[%s3] sm:$0xf]
        %v440 = vld [vmem:[%s3 + $0x4] sm:$0xf]
        %v441 = vld [vmem:[%s3 + $0x8] sm:$0xf]
        %v442 = vld [vmem:[%s3 + $0xc] sm:$0xf]
        %v443 = vld [vmem:[%s3 + $0x10] sm:$0xf]
        %v444 = vld [vmem:[%s3 + $0x14] sm:$0xf]
        %v445 = vld [vmem:[%s3 + $0x18] sm:$0xf]
        %v446 = vld [vmem:[%s3 + $0x1c] sm:$0xf]
        %v511 = vunpack.c.l.b16 %v375
        %v512 = vunpack.c.l.b16 %v376
        %v513 = vunpack.c.l.b16 %v377
        %v514 = vunpack.c.l.b16 %v378
        %v515 = vunpack.c.l.b16 %v379
        %v516 = vunpack.c.l.b16 %v380
        %v517 = vunpack.c.l.b16 %v381
        %v518 = vunpack.c.l.b16 %v382
        %v519 = vunpack.c.l.b16 %v383
        %v520 = vunpack.c.l.b16 %v384
        %v521 = vunpack.c.l.b16 %v385
        %v522 = vunpack.c.l.b16 %v386
        %v523 = vunpack.c.l.b16 %v387
        %v524 = vunpack.c.l.b16 %v388
        %v525 = vunpack.c.l.b16 %v389
        %v526 = vunpack.c.l.b16 %v390
        %v527 = vunpack.c.l.b16 %v391
        %v528 = vunpack.c.l.b16 %v392
        %v529 = vunpack.c.l.b16 %v393
        %v530 = vunpack.c.l.b16 %v394
        %v531 = vunpack.c.l.b16 %v395
        %v532 = vunpack.c.l.b16 %v396
        %v533 = vunpack.c.l.b16 %v397
        %v534 = vunpack.c.l.b16 %v398
        %v535 = vunpack.c.l.b16 %v399
        %v536 = vunpack.c.l.b16 %v400
        %v537 = vunpack.c.l.b16 %v401
        %v538 = vunpack.c.l.b16 %v402
        %v539 = vunpack.c.l.b16 %v403
        %v540 = vunpack.c.l.b16 %v404
        %v541 = vunpack.c.l.b16 %v405
        %v542 = vunpack.c.l.b16 %v406
        %v543 = vunpack.c.l.b16 %v407
        %v544 = vunpack.c.l.b16 %v408
        %v545 = vunpack.c.l.b16 %v409
        %v546 = vunpack.c.l.b16 %v410
        %v547 = vunpack.c.l.b16 %v411
        %v548 = vunpack.c.l.b16 %v412
        %v549 = vunpack.c.l.b16 %v413
        %v550 = vunpack.c.l.b16 %v414
        %v551 = vunpack.c.l.b16 %v415
        %v552 = vunpack.c.l.b16 %v416
        %v553 = vunpack.c.l.b16 %v417
        %v554 = vunpack.c.l.b16 %v418
        %v555 = vunpack.c.l.b16 %v419
        %v556 = vunpack.c.l.b16 %v420
        %v557 = vunpack.c.l.b16 %v421
        %v558 = vunpack.c.l.b16 %v422
        %v559 = vunpack.c.l.b16 %v423
        %v560 = vunpack.c.l.b16 %v424
        %v561 = vunpack.c.l.b16 %v425
        %v562 = vunpack.c.l.b16 %v426
        %v563 = vunpack.c.l.b16 %v427
        %v564 = vunpack.c.l.b16 %v428
        %v565 = vunpack.c.l.b16 %v429
        %v566 = vunpack.c.l.b16 %v430
        %v567 = vunpack.c.l.b16 %v431
        %v568 = vunpack.c.l.b16 %v432
        %v569 = vunpack.c.l.b16 %v433
        %v570 = vunpack.c.l.b16 %v434
        %v571 = vunpack.c.l.b16 %v435
        %v572 = vunpack.c.l.b16 %v436
        %v573 = vunpack.c.l.b16 %v437
        %v574 = vunpack.c.l.b16 %v438
        %v575 = vpack.c.b16 %v512, %v511
        %v576 = vpack.c.b16 %v514, %v513
        %v577 = vpack.c.b16 %v516, %v515
        %v578 = vpack.c.b16 %v518, %v517
        %v579 = vpack.c.b16 %v520, %v519
        %v580 = vpack.c.b16 %v522, %v521
        %v581 = vpack.c.b16 %v524, %v523
        %v582 = vpack.c.b16 %v526, %v525
        %v583 = vpack.c.b16 %v528, %v527
        %v584 = vpack.c.b16 %v530, %v529
        %v585 = vpack.c.b16 %v532, %v531
        %v586 = vpack.c.b16 %v534, %v533
        %v587 = vpack.c.b16 %v536, %v535
        %v588 = vpack.c.b16 %v538, %v537
        %v589 = vpack.c.b16 %v540, %v539
        %v590 = vpack.c.b16 %v542, %v541
        %v591 = vpack.c.b16 %v544, %v543
        %v592 = vpack.c.b16 %v546, %v545
        %v593 = vpack.c.b16 %v548, %v547
        %v594 = vpack.c.b16 %v550, %v549
        %v595 = vpack.c.b16 %v552, %v551
        %v596 = vpack.c.b16 %v554, %v553
        %v597 = vpack.c.b16 %v556, %v555
        %v598 = vpack.c.b16 %v558, %v557
        %v599 = vpack.c.b16 %v560, %v559
        %v600 = vpack.c.b16 %v562, %v561
        %v601 = vpack.c.b16 %v564, %v563
        %v602 = vpack.c.b16 %v566, %v565
        %v603 = vpack.c.b16 %v568, %v567
        %v604 = vpack.c.b16 %v570, %v569
        %v605 = vpack.c.b16 %v572, %v571
        %v606 = vpack.c.b16 %v574, %v573
        %v615 = vunpack.c.l.b16 %v439
        %v616 = vunpack.c.l.b16 %v440
        %v617 = vunpack.c.l.b16 %v441
        %v618 = vunpack.c.l.b16 %v442
        %v619 = vunpack.c.l.b16 %v443
        %v620 = vunpack.c.l.b16 %v444
        %v621 = vunpack.c.l.b16 %v445
        %v622 = vunpack.c.l.b16 %v446
        %v623 = vpack.c.b16 %v616, %v615
        %v624 = vpack.c.b16 %v618, %v617
        %v625 = vpack.c.b16 %v620, %v619
        %v626 = vpack.c.b16 %v622, %v621
        %vm631 = vcmask 523264
        %v633 = vsel %vm631, %v575, 0
        %v636 = vsel %vm631, %v576, 0
        %v639 = vsel %vm631, %v577, 0
        %v642 = vsel %vm631, %v578, 0
        %v645 = vsel %vm631, %v579, 0
        %v648 = vsel %vm631, %v580, 0
        %v651 = vsel %vm631, %v581, 0
        %v654 = vsel %vm631, %v582, 0
        %v657 = vsel %vm631, %v583, 0
        %v660 = vsel %vm631, %v584, 0
        %v663 = vsel %vm631, %v585, 0
        %v666 = vsel %vm631, %v586, 0
        %v669 = vsel %vm631, %v587, 0
        %v672 = vsel %vm631, %v588, 0
        %v675 = vsel %vm631, %v589, 0
        %v678 = vsel %vm631, %v590, 0
        %v681 = vsel %vm631, %v591, 0
        %v684 = vsel %vm631, %v592, 0
        %v687 = vsel %vm631, %v593, 0
        %v690 = vsel %vm631, %v594, 0
        %v693 = vsel %vm631, %v595, 0
        %v696 = vsel %vm631, %v596, 0
        %v699 = vsel %vm631, %v597, 0
        %v702 = vsel %vm631, %v598, 0
        %v705 = vsel %vm631, %v599, 0
        %v708 = vsel %vm631, %v600, 0
        %v711 = vsel %vm631, %v601, 0
        %v714 = vsel %vm631, %v602, 0
        %v717 = vsel %vm631, %v603, 0
        %v720 = vsel %vm631, %v604, 0
        %v723 = vsel %vm631, %v605, 0
        %v726 = vsel %vm631, %v606, 0
        %728 = vmatprep.subr.bf16.mxu0 0
        %729 = vmatpush1.bf16.msra.mxu0 0
        %730 = vmatprep.subr.bf16.mxu0 0
        %731 = vmatpush1.bf16.msra.mxu0 0
        %732 = vmatprep.subr.bf16.mxu0 0
        %733 = vmatpush1.bf16.msra.mxu0 0
        %734 = vmatprep.subr.bf16.mxu0 0
        %735 = vmatpush1.bf16.msra.mxu0 0
        %736 = vmatprep.subr.bf16.mxu0 0
        %737 = vmatpush1.bf16.msra.mxu0 %v626
        %738 = vmatprep.subr.bf16.mxu0 0
        %739 = vmatpush1.bf16.msra.mxu0 %v625
        %740 = vmatprep.subr.bf16.mxu0 0
        %741 = vmatpush1.bf16.msra.mxu0 %v624
        %742 = vmatprep.subr.bf16.mxu0 0
        %743 = vmatpush1.bf16.msra.mxu0 %v623
        %744 = vmatprep.subr.bf16.mxu0 0
        %745 = vmatpush2.bf16.msra.mxu0 0
        %746 = vmatprep.subr.bf16.mxu0 0
        %747 = vmatpush2.bf16.msra.mxu0 0
        %748 = vmatprep.subr.bf16.mxu0 0
        %749 = vmatpush2.bf16.msra.mxu0 0
        %750 = vmatprep.subr.bf16.mxu0 0
        %751 = vmatpush2.bf16.msra.mxu0 0
        %752 = vmatprep.subr.bf16.mxu0 0
        %753 = vmatpush2.bf16.msra.mxu0 0
        %754 = vmatprep.subr.bf16.mxu0 0
        %755 = vmatpush2.bf16.msra.mxu0 0
        %756 = vmatprep.subr.bf16.mxu0 0
        %757 = vmatpush2.bf16.msra.mxu0 0
        %758 = vmatprep.subr.bf16.mxu0 0
        %759 = vmatpush2.bf16.msra.mxu0 0
        %760 = vmatprep.mubr.bf16.mxu0 0
        %761 = vmatmul.mubr.bf16.gmra.mxu0 %v633
        %v762 = vpop.f32.mrf.mxu0
        %v763 = vadd.f32 0.0, %v762
        %v764 = vpop.f32.mrf.mxu0
        %v765 = vpop.f32.mrf.mxu0
        %v766 = vadd.f32 0.0, %v765
        %v767 = vpop.f32.mrf.mxu0
        %768 = vmatprep.mubr.bf16.mxu0 0
        %769 = vmatmul.mubr.bf16.gmra.mxu0 %v636
        %v770 = vpop.f32.mrf.mxu0
        %v771 = vadd.f32 0.0, %v770
        %v772 = vpop.f32.mrf.mxu0
        %v773 = vpop.f32.mrf.mxu0
        %v774 = vadd.f32 0.0, %v773
        %v775 = vpop.f32.mrf.mxu0
        %776 = vmatprep.mubr.bf16.mxu0 0
        %777 = vmatmul.mubr.bf16.gmra.mxu0 %v639
        %v778 = vpop.f32.mrf.mxu0
        %v779 = vadd.f32 0.0, %v778
        %v780 = vpop.f32.mrf.mxu0
        %v781 = vpop.f32.mrf.mxu0
        %v782 = vadd.f32 0.0, %v781
        %v783 = vpop.f32.mrf.mxu0
        %784 = vmatprep.mubr.bf16.mxu0 0
        %785 = vmatmul.mubr.bf16.gmra.mxu0 %v642
        %v786 = vpop.f32.mrf.mxu0
        %v787 = vadd.f32 0.0, %v786
        %v788 = vpop.f32.mrf.mxu0
        %v789 = vpop.f32.mrf.mxu0
        %v790 = vadd.f32 0.0, %v789
        %v791 = vpop.f32.mrf.mxu0
        %792 = vmatprep.mubr.bf16.mxu0 0
        %793 = vmatmul.mubr.bf16.gmra.mxu0 %v645
        %v794 = vpop.f32.mrf.mxu0
        %v795 = vadd.f32 0.0, %v794
        %v796 = vpop.f32.mrf.mxu0
        %v797 = vpop.f32.mrf.mxu0
        %v798 = vadd.f32 0.0, %v797
        %v799 = vpop.f32.mrf.mxu0
        %800 = vmatprep.mubr.bf16.mxu0 0
        %801 = vmatmul.mubr.bf16.gmra.mxu0 %v648
        %v802 = vpop.f32.mrf.mxu0
        %v803 = vadd.f32 0.0, %v802
        %v804 = vpop.f32.mrf.mxu0
        %v805 = vpop.f32.mrf.mxu0
        %v806 = vadd.f32 0.0, %v805
        %v807 = vpop.f32.mrf.mxu0
        %808 = vmatprep.mubr.bf16.mxu0 0
        %809 = vmatmul.mubr.bf16.gmra.mxu0 %v651
        %v810 = vpop.f32.mrf.mxu0
        %v811 = vadd.f32 0.0, %v810
        %v812 = vpop.f32.mrf.mxu0
        %v813 = vpop.f32.mrf.mxu0
        %v814 = vadd.f32 0.0, %v813
        %v815 = vpop.f32.mrf.mxu0
        %816 = vmatprep.mubr.bf16.mxu0 0
        %817 = vmatmul.mubr.bf16.gmra.mxu0 %v654
        %v818 = vpop.f32.mrf.mxu0
        %v819 = vadd.f32 0.0, %v818
        %v820 = vpop.f32.mrf.mxu0
        %v821 = vpop.f32.mrf.mxu0
        %v822 = vadd.f32 0.0, %v821
        %v823 = vpop.f32.mrf.mxu0
        %824 = vmatprep.mubr.bf16.mxu0 0
        %825 = vmatmul.mubr.bf16.gmra.mxu0 %v657
        %v826 = vpop.f32.mrf.mxu0
        %v827 = vadd.f32 0.0, %v826
        %v828 = vpop.f32.mrf.mxu0
        %v829 = vpop.f32.mrf.mxu0
        %v830 = vadd.f32 0.0, %v829
        %v831 = vpop.f32.mrf.mxu0
        %832 = vmatprep.mubr.bf16.mxu0 0
        %833 = vmatmul.mubr.bf16.gmra.mxu0 %v660
        %v834 = vpop.f32.mrf.mxu0
        %v835 = vadd.f32 0.0, %v834
        %v836 = vpop.f32.mrf.mxu0
        %v837 = vpop.f32.mrf.mxu0
        %v838 = vadd.f32 0.0, %v837
        %v839 = vpop.f32.mrf.mxu0
        %840 = vmatprep.mubr.bf16.mxu0 0
        %841 = vmatmul.mubr.bf16.gmra.mxu0 %v663
        %v842 = vpop.f32.mrf.mxu0
        %v843 = vadd.f32 0.0, %v842
        %v844 = vpop.f32.mrf.mxu0
        %v845 = vpop.f32.mrf.mxu0
        %v846 = vadd.f32 0.0, %v845
        %v847 = vpop.f32.mrf.mxu0
        %848 = vmatprep.mubr.bf16.mxu0 0
        %849 = vmatmul.mubr.bf16.gmra.mxu0 %v666
        %v850 = vpop.f32.mrf.mxu0
        %v851 = vadd.f32 0.0, %v850
        %v852 = vpop.f32.mrf.mxu0
        %v853 = vpop.f32.mrf.mxu0
        %v854 = vadd.f32 0.0, %v853
        %v855 = vpop.f32.mrf.mxu0
        %856 = vmatprep.mubr.bf16.mxu0 0
        %857 = vmatmul.mubr.bf16.gmra.mxu0 %v669
        %v858 = vpop.f32.mrf.mxu0
        %v859 = vadd.f32 0.0, %v858
        %v860 = vpop.f32.mrf.mxu0
        %v861 = vpop.f32.mrf.mxu0
        %v862 = vadd.f32 0.0, %v861
        %v863 = vpop.f32.mrf.mxu0
        %864 = vmatprep.mubr.bf16.mxu0 0
        %865 = vmatmul.mubr.bf16.gmra.mxu0 %v672
        %v866 = vpop.f32.mrf.mxu0
        %v867 = vadd.f32 0.0, %v866
        %v868 = vpop.f32.mrf.mxu0
        %v869 = vpop.f32.mrf.mxu0
        %v870 = vadd.f32 0.0, %v869
        %v871 = vpop.f32.mrf.mxu0
        %872 = vmatprep.mubr.bf16.mxu0 0
        %873 = vmatmul.mubr.bf16.gmra.mxu0 %v675
        %v874 = vpop.f32.mrf.mxu0
        %v875 = vadd.f32 0.0, %v874
        %v876 = vpop.f32.mrf.mxu0
        %v877 = vpop.f32.mrf.mxu0
        %v878 = vadd.f32 0.0, %v877
        %v879 = vpop.f32.mrf.mxu0
        %880 = vmatprep.mubr.bf16.mxu0 0
        %881 = vmatmul.mubr.bf16.gmra.mxu0 %v678
        %v882 = vpop.f32.mrf.mxu0
        %v883 = vadd.f32 0.0, %v882
        %v884 = vpop.f32.mrf.mxu0
        %v885 = vpop.f32.mrf.mxu0
        %v886 = vadd.f32 0.0, %v885
        %v887 = vpop.f32.mrf.mxu0
        %888 = vmatprep.mubr.bf16.mxu0 0
        %889 = vmatmul.mubr.bf16.gmra.mxu0 %v681
        %v890 = vpop.f32.mrf.mxu0
        %v891 = vadd.f32 0.0, %v890
        %v892 = vpop.f32.mrf.mxu0
        %v893 = vpop.f32.mrf.mxu0
        %v894 = vadd.f32 0.0, %v893
        %v895 = vpop.f32.mrf.mxu0
        %896 = vmatprep.mubr.bf16.mxu0 0
        %897 = vmatmul.mubr.bf16.gmra.mxu0 %v684
        %v898 = vpop.f32.mrf.mxu0
        %v899 = vadd.f32 0.0, %v898
        %v900 = vpop.f32.mrf.mxu0
        %v901 = vpop.f32.mrf.mxu0
        %v902 = vadd.f32 0.0, %v901
        %v903 = vpop.f32.mrf.mxu0
        %904 = vmatprep.mubr.bf16.mxu0 0
        %905 = vmatmul.mubr.bf16.gmra.mxu0 %v687
        %v906 = vpop.f32.mrf.mxu0
        %v907 = vadd.f32 0.0, %v906
        %v908 = vpop.f32.mrf.mxu0
        %v909 = vpop.f32.mrf.mxu0
        %v910 = vadd.f32 0.0, %v909
        %v911 = vpop.f32.mrf.mxu0
        %912 = vmatprep.mubr.bf16.mxu0 0
        %913 = vmatmul.mubr.bf16.gmra.mxu0 %v690
        %v914 = vpop.f32.mrf.mxu0
        %v915 = vadd.f32 0.0, %v914
        %v916 = vpop.f32.mrf.mxu0
        %v917 = vpop.f32.mrf.mxu0
        %v918 = vadd.f32 0.0, %v917
        %v919 = vpop.f32.mrf.mxu0
        %920 = vmatprep.mubr.bf16.mxu0 0
        %921 = vmatmul.mubr.bf16.gmra.mxu0 %v693
        %v922 = vpop.f32.mrf.mxu0
        %v923 = vadd.f32 0.0, %v922
        %v924 = vpop.f32.mrf.mxu0
        %v925 = vpop.f32.mrf.mxu0
        %v926 = vadd.f32 0.0, %v925
        %v927 = vpop.f32.mrf.mxu0
        %928 = vmatprep.mubr.bf16.mxu0 0
        %929 = vmatmul.mubr.bf16.gmra.mxu0 %v696
        %v930 = vpop.f32.mrf.mxu0
        %v931 = vadd.f32 0.0, %v930
        %v932 = vpop.f32.mrf.mxu0
        %v933 = vpop.f32.mrf.mxu0
        %v934 = vadd.f32 0.0, %v933
        %v935 = vpop.f32.mrf.mxu0
        %936 = vmatprep.mubr.bf16.mxu0 0
        %937 = vmatmul.mubr.bf16.gmra.mxu0 %v699
        %v938 = vpop.f32.mrf.mxu0
        %v939 = vadd.f32 0.0, %v938
        %v940 = vpop.f32.mrf.mxu0
        %v941 = vpop.f32.mrf.mxu0
        %v942 = vadd.f32 0.0, %v941
        %v943 = vpop.f32.mrf.mxu0
        %944 = vmatprep.mubr.bf16.mxu0 0
        %945 = vmatmul.mubr.bf16.gmra.mxu0 %v702
        %v946 = vpop.f32.mrf.mxu0
        %v947 = vadd.f32 0.0, %v946
        %v948 = vpop.f32.mrf.mxu0
        %v949 = vpop.f32.mrf.mxu0
        %v950 = vadd.f32 0.0, %v949
        %v951 = vpop.f32.mrf.mxu0
        %952 = vmatprep.mubr.bf16.mxu0 0
        %953 = vmatmul.mubr.bf16.gmra.mxu0 %v705
        %v954 = vpop.f32.mrf.mxu0
        %v955 = vadd.f32 0.0, %v954
        %v956 = vpop.f32.mrf.mxu0
        %v957 = vpop.f32.mrf.mxu0
        %v958 = vadd.f32 0.0, %v957
        %v959 = vpop.f32.mrf.mxu0
        %960 = vmatprep.mubr.bf16.mxu0 0
        %961 = vmatmul.mubr.bf16.gmra.mxu0 %v708
        %v962 = vpop.f32.mrf.mxu0
        %v963 = vadd.f32 0.0, %v962
        %v964 = vpop.f32.mrf.mxu0
        %v965 = vpop.f32.mrf.mxu0
        %v966 = vadd.f32 0.0, %v965
        %v967 = vpop.f32.mrf.mxu0
        %968 = vmatprep.mubr.bf16.mxu0 0
        %969 = vmatmul.mubr.bf16.gmra.mxu0 %v711
        %v970 = vpop.f32.mrf.mxu0
        %v971 = vadd.f32 0.0, %v970
        %v972 = vpop.f32.mrf.mxu0
        %v973 = vpop.f32.mrf.mxu0
        %v974 = vadd.f32 0.0, %v973
        %v975 = vpop.f32.mrf.mxu0
        %976 = vmatprep.mubr.bf16.mxu0 0
        %977 = vmatmul.mubr.bf16.gmra.mxu0 %v714
        %v978 = vpop.f32.mrf.mxu0
        %v979 = vadd.f32 0.0, %v978
        %v980 = vpop.f32.mrf.mxu0
        %v981 = vpop.f32.mrf.mxu0
        %v982 = vadd.f32 0.0, %v981
        %v983 = vpop.f32.mrf.mxu0
        %984 = vmatprep.mubr.bf16.mxu0 0
        %985 = vmatmul.mubr.bf16.gmra.mxu0 %v717
        %v986 = vpop.f32.mrf.mxu0
        %v987 = vadd.f32 0.0, %v986
        %v988 = vpop.f32.mrf.mxu0
        %v989 = vpop.f32.mrf.mxu0
        %v990 = vadd.f32 0.0, %v989
        %v991 = vpop.f32.mrf.mxu0
        %992 = vmatprep.mubr.bf16.mxu0 0
        %993 = vmatmul.mubr.bf16.gmra.mxu0 %v720
        %v994 = vpop.f32.mrf.mxu0
        %v995 = vadd.f32 0.0, %v994
        %v996 = vpop.f32.mrf.mxu0
        %v997 = vpop.f32.mrf.mxu0
        %v998 = vadd.f32 0.0, %v997
        %v999 = vpop.f32.mrf.mxu0
        %1000 = vmatprep.mubr.bf16.mxu0 0
        %1001 = vmatmul.mubr.bf16.gmra.mxu0 %v723
        %v1002 = vpop.f32.mrf.mxu0
        %v1003 = vadd.f32 0.0, %v1002
        %v1004 = vpop.f32.mrf.mxu0
        %v1005 = vpop.f32.mrf.mxu0
        %v1006 = vadd.f32 0.0, %v1005
        %v1007 = vpop.f32.mrf.mxu0
        %1008 = vmatprep.mubr.bf16.mxu0 0
        %1009 = vmatmul.mubr.bf16.gmra.mxu0 %v726
        %v1010 = vpop.f32.mrf.mxu0
        %v1011 = vadd.f32 0.0, %v1010
        %v1012 = vpop.f32.mrf.mxu0
        %v1013 = vpop.f32.mrf.mxu0
        %v1014 = vadd.f32 0.0, %v1013
        %v1015 = vpop.f32.mrf.mxu0
        %1016 = vdwg.mxu0
        %v1081 = vunpack.c.l.b16 %v303
        %v1082 = vunpack.c.l.b16 %v304
        %v1083 = vunpack.c.l.b16 %v305
        %v1084 = vunpack.c.l.b16 %v306
        %v1085 = vunpack.c.l.b16 %v307
        %v1086 = vunpack.c.l.b16 %v308
        %v1087 = vunpack.c.l.b16 %v309
        %v1088 = vunpack.c.l.b16 %v310
        %v1089 = vunpack.c.l.b16 %v311
        %v1090 = vunpack.c.l.b16 %v312
        %v1091 = vunpack.c.l.b16 %v313
        %v1092 = vunpack.c.l.b16 %v314
        %v1093 = vunpack.c.l.b16 %v315
        %v1094 = vunpack.c.l.b16 %v316
        %v1095 = vunpack.c.l.b16 %v317
        %v1096 = vunpack.c.l.b16 %v318
        %v1097 = vunpack.c.l.b16 %v319
        %v1098 = vunpack.c.l.b16 %v320
        %v1099 = vunpack.c.l.b16 %v321
        %v1100 = vunpack.c.l.b16 %v322
        %v1101 = vunpack.c.l.b16 %v323
        %v1102 = vunpack.c.l.b16 %v324
        %v1103 = vunpack.c.l.b16 %v325
        %v1104 = vunpack.c.l.b16 %v326
        %v1105 = vunpack.c.l.b16 %v327
        %v1106 = vunpack.c.l.b16 %v328
        %v1107 = vunpack.c.l.b16 %v329
        %v1108 = vunpack.c.l.b16 %v330
        %v1109 = vunpack.c.l.b16 %v331
        %v1110 = vunpack.c.l.b16 %v332
        %v1111 = vunpack.c.l.b16 %v333
        %v1112 = vunpack.c.l.b16 %v334
        %v1113 = vunpack.c.l.b16 %v335
        %v1114 = vunpack.c.l.b16 %v336
        %v1115 = vunpack.c.l.b16 %v337
        %v1116 = vunpack.c.l.b16 %v338
        %v1117 = vunpack.c.l.b16 %v339
        %v1118 = vunpack.c.l.b16 %v340
        %v1119 = vunpack.c.l.b16 %v341
        %v1120 = vunpack.c.l.b16 %v342
        %v1121 = vunpack.c.l.b16 %v343
        %v1122 = vunpack.c.l.b16 %v344
        %v1123 = vunpack.c.l.b16 %v345
        %v1124 = vunpack.c.l.b16 %v346
        %v1125 = vunpack.c.l.b16 %v347
        %v1126 = vunpack.c.l.b16 %v348
        %v1127 = vunpack.c.l.b16 %v349
        %v1128 = vunpack.c.l.b16 %v350
        %v1129 = vunpack.c.l.b16 %v351
        %v1130 = vunpack.c.l.b16 %v352
        %v1131 = vunpack.c.l.b16 %v353
        %v1132 = vunpack.c.l.b16 %v354
        %v1133 = vunpack.c.l.b16 %v355
        %v1134 = vunpack.c.l.b16 %v356
        %v1135 = vunpack.c.l.b16 %v357
        %v1136 = vunpack.c.l.b16 %v358
        %v1137 = vunpack.c.l.b16 %v359
        %v1138 = vunpack.c.l.b16 %v360
        %v1139 = vunpack.c.l.b16 %v361
        %v1140 = vunpack.c.l.b16 %v362
        %v1141 = vunpack.c.l.b16 %v363
        %v1142 = vunpack.c.l.b16 %v364
        %v1143 = vunpack.c.l.b16 %v365
        %v1144 = vunpack.c.l.b16 %v366
        %v1145 = vpack.c.b16 %v1082, %v1081
        %v1146 = vpack.c.b16 %v1084, %v1083
        %v1147 = vpack.c.b16 %v1086, %v1085
        %v1148 = vpack.c.b16 %v1088, %v1087
        %v1149 = vpack.c.b16 %v1090, %v1089
        %v1150 = vpack.c.b16 %v1092, %v1091
        %v1151 = vpack.c.b16 %v1094, %v1093
        %v1152 = vpack.c.b16 %v1096, %v1095
        %v1153 = vpack.c.b16 %v1098, %v1097
        %v1154 = vpack.c.b16 %v1100, %v1099
        %v1155 = vpack.c.b16 %v1102, %v1101
        %v1156 = vpack.c.b16 %v1104, %v1103
        %v1157 = vpack.c.b16 %v1106, %v1105
        %v1158 = vpack.c.b16 %v1108, %v1107
        %v1159 = vpack.c.b16 %v1110, %v1109
        %v1160 = vpack.c.b16 %v1112, %v1111
        %v1161 = vpack.c.b16 %v1114, %v1113
        %v1162 = vpack.c.b16 %v1116, %v1115
        %v1163 = vpack.c.b16 %v1118, %v1117
        %v1164 = vpack.c.b16 %v1120, %v1119
        %v1165 = vpack.c.b16 %v1122, %v1121
        %v1166 = vpack.c.b16 %v1124, %v1123
        %v1167 = vpack.c.b16 %v1126, %v1125
        %v1168 = vpack.c.b16 %v1128, %v1127
        %v1169 = vpack.c.b16 %v1130, %v1129
        %v1170 = vpack.c.b16 %v1132, %v1131
        %v1171 = vpack.c.b16 %v1134, %v1133
        %v1172 = vpack.c.b16 %v1136, %v1135
        %v1173 = vpack.c.b16 %v1138, %v1137
        %v1174 = vpack.c.b16 %v1140, %v1139
        %v1175 = vpack.c.b16 %v1142, %v1141
        %v1176 = vpack.c.b16 %v1144, %v1143
        %v1185 = vunpack.c.l.b16 %v367
        %v1186 = vunpack.c.l.b16 %v368
        %v1187 = vunpack.c.l.b16 %v369
        %v1188 = vunpack.c.l.b16 %v370
        %v1189 = vunpack.c.l.b16 %v371
        %v1190 = vunpack.c.l.b16 %v372
        %v1191 = vunpack.c.l.b16 %v373
        %v1192 = vunpack.c.l.b16 %v374
        %v1193 = vpack.c.b16 %v1186, %v1185
        %v1194 = vpack.c.b16 %v1188, %v1187
        %v1195 = vpack.c.b16 %v1190, %v1189
        %v1196 = vpack.c.b16 %v1192, %v1191
        %v1202 = vsel %vm631, %v1145, 0
        %v1205 = vsel %vm631, %v1146, 0
        %v1208 = vsel %vm631, %v1147, 0
        %v1211 = vsel %vm631, %v1148, 0
        %v1214 = vsel %vm631, %v1149, 0
        %v1217 = vsel %vm631, %v1150, 0
        %v1220 = vsel %vm631, %v1151, 0
        %v1223 = vsel %vm631, %v1152, 0
        %v1226 = vsel %vm631, %v1153, 0
        %v1229 = vsel %vm631, %v1154, 0
        %v1232 = vsel %vm631, %v1155, 0
        %v1235 = vsel %vm631, %v1156, 0
        %v1238 = vsel %vm631, %v1157, 0
        %v1241 = vsel %vm631, %v1158, 0
        %v1244 = vsel %vm631, %v1159, 0
        %v1247 = vsel %vm631, %v1160, 0
        %v1250 = vsel %vm631, %v1161, 0
        %v1253 = vsel %vm631, %v1162, 0
        %v1256 = vsel %vm631, %v1163, 0
        %v1259 = vsel %vm631, %v1164, 0
        %v1262 = vsel %vm631, %v1165, 0
        %v1265 = vsel %vm631, %v1166, 0
        %v1268 = vsel %vm631, %v1167, 0
        %v1271 = vsel %vm631, %v1168, 0
        %v1274 = vsel %vm631, %v1169, 0
        %v1277 = vsel %vm631, %v1170, 0
        %v1280 = vsel %vm631, %v1171, 0
        %v1283 = vsel %vm631, %v1172, 0
        %v1286 = vsel %vm631, %v1173, 0
        %v1289 = vsel %vm631, %v1174, 0
        %v1292 = vsel %vm631, %v1175, 0
        %v1295 = vsel %vm631, %v1176, 0
        %1297 = vmatprep.subr.bf16.mxu0 0
        %1298 = vmatpush1.bf16.msra.mxu0 0
        %1299 = vmatprep.subr.bf16.mxu0 0
        %1300 = vmatpush1.bf16.msra.mxu0 0
        %1301 = vmatprep.subr.bf16.mxu0 0
        %1302 = vmatpush1.bf16.msra.mxu0 0
        %1303 = vmatprep.subr.bf16.mxu0 0
        %1304 = vmatpush1.bf16.msra.mxu0 0
        %1305 = vmatprep.subr.bf16.mxu0 0
        %1306 = vmatpush1.bf16.msra.mxu0 %v1196
        %1307 = vmatprep.subr.bf16.mxu0 0
        %1308 = vmatpush1.bf16.msra.mxu0 %v1195
        %1309 = vmatprep.subr.bf16.mxu0 0
        %1310 = vmatpush1.bf16.msra.mxu0 %v1194
        %1311 = vmatprep.subr.bf16.mxu0 0
        %1312 = vmatpush1.bf16.msra.mxu0 %v1193
        %1313 = vmatprep.subr.bf16.mxu0 0
        %1314 = vmatpush2.bf16.msra.mxu0 0
        %1315 = vmatprep.subr.bf16.mxu0 0
        %1316 = vmatpush2.bf16.msra.mxu0 0
        %1317 = vmatprep.subr.bf16.mxu0 0
        %1318 = vmatpush2.bf16.msra.mxu0 0
        %1319 = vmatprep.subr.bf16.mxu0 0
        %1320 = vmatpush2.bf16.msra.mxu0 0
        %1321 = vmatprep.subr.bf16.mxu0 0
        %1322 = vmatpush2.bf16.msra.mxu0 0
        %1323 = vmatprep.subr.bf16.mxu0 0
        %1324 = vmatpush2.bf16.msra.mxu0 0
        %1325 = vmatprep.subr.bf16.mxu0 0
        %1326 = vmatpush2.bf16.msra.mxu0 0
        %1327 = vmatprep.subr.bf16.mxu0 0
        %1328 = vmatpush2.bf16.msra.mxu0 0
        %1329 = vmatprep.mubr.bf16.mxu0 0
        %1330 = vmatmul.mubr.bf16.gmra.mxu0 %v1202
        %v1331 = vpop.f32.mrf.mxu0
        %v1332 = vadd.f32 %v763, %v1331
        %v1333 = vpop.f32.mrf.mxu0
        %v1334 = vpop.f32.mrf.mxu0
        %v1335 = vadd.f32 %v766, %v1334
        %v1336 = vpop.f32.mrf.mxu0
        %1337 = vmatprep.mubr.bf16.mxu0 0
        %1338 = vmatmul.mubr.bf16.gmra.mxu0 %v1205
        %v1339 = vpop.f32.mrf.mxu0
        %v1340 = vadd.f32 %v771, %v1339
        %v1341 = vpop.f32.mrf.mxu0
        %v1342 = vpop.f32.mrf.mxu0
        %v1343 = vadd.f32 %v774, %v1342
        %v1344 = vpop.f32.mrf.mxu0
        %1345 = vmatprep.mubr.bf16.mxu0 0
        %1346 = vmatmul.mubr.bf16.gmra.mxu0 %v1208
        %v1347 = vpop.f32.mrf.mxu0
        %v1348 = vadd.f32 %v779, %v1347
        %v1349 = vpop.f32.mrf.mxu0
        %v1350 = vpop.f32.mrf.mxu0
        %v1351 = vadd.f32 %v782, %v1350
        %v1352 = vpop.f32.mrf.mxu0
        %1353 = vmatprep.mubr.bf16.mxu0 0
        %1354 = vmatmul.mubr.bf16.gmra.mxu0 %v1211
        %v1355 = vpop.f32.mrf.mxu0
        %v1356 = vadd.f32 %v787, %v1355
        %v1357 = vpop.f32.mrf.mxu0
        %v1358 = vpop.f32.mrf.mxu0
        %v1359 = vadd.f32 %v790, %v1358
        %v1360 = vpop.f32.mrf.mxu0
        %1361 = vmatprep.mubr.bf16.mxu0 0
        %1362 = vmatmul.mubr.bf16.gmra.mxu0 %v1214
        %v1363 = vpop.f32.mrf.mxu0
        %v1364 = vadd.f32 %v795, %v1363
        %v1365 = vpop.f32.mrf.mxu0
        %v1366 = vpop.f32.mrf.mxu0
        %v1367 = vadd.f32 %v798, %v1366
        %v1368 = vpop.f32.mrf.mxu0
        %1369 = vmatprep.mubr.bf16.mxu0 0
        %1370 = vmatmul.mubr.bf16.gmra.mxu0 %v1217
        %v1371 = vpop.f32.mrf.mxu0
        %v1372 = vadd.f32 %v803, %v1371
        %v1373 = vpop.f32.mrf.mxu0
        %v1374 = vpop.f32.mrf.mxu0
        %v1375 = vadd.f32 %v806, %v1374
        %v1376 = vpop.f32.mrf.mxu0
        %1377 = vmatprep.mubr.bf16.mxu0 0
        %1378 = vmatmul.mubr.bf16.gmra.mxu0 %v1220
        %v1379 = vpop.f32.mrf.mxu0
        %v1380 = vadd.f32 %v811, %v1379
        %v1381 = vpop.f32.mrf.mxu0
        %v1382 = vpop.f32.mrf.mxu0
        %v1383 = vadd.f32 %v814, %v1382
        %v1384 = vpop.f32.mrf.mxu0
        %1385 = vmatprep.mubr.bf16.mxu0 0
        %1386 = vmatmul.mubr.bf16.gmra.mxu0 %v1223
        %v1387 = vpop.f32.mrf.mxu0
        %v1388 = vadd.f32 %v819, %v1387
        %v1389 = vpop.f32.mrf.mxu0
        %v1390 = vpop.f32.mrf.mxu0
        %v1391 = vadd.f32 %v822, %v1390
        %v1392 = vpop.f32.mrf.mxu0
        %1393 = vmatprep.mubr.bf16.mxu0 0
        %1394 = vmatmul.mubr.bf16.gmra.mxu0 %v1226
        %v1395 = vpop.f32.mrf.mxu0
        %v1396 = vadd.f32 %v827, %v1395
        %v1397 = vpop.f32.mrf.mxu0
        %v1398 = vpop.f32.mrf.mxu0
        %v1399 = vadd.f32 %v830, %v1398
        %v1400 = vpop.f32.mrf.mxu0
        %1401 = vmatprep.mubr.bf16.mxu0 0
        %1402 = vmatmul.mubr.bf16.gmra.mxu0 %v1229
        %v1403 = vpop.f32.mrf.mxu0
        %v1404 = vadd.f32 %v835, %v1403
        %v1405 = vpop.f32.mrf.mxu0
        %v1406 = vpop.f32.mrf.mxu0
        %v1407 = vadd.f32 %v838, %v1406
        %v1408 = vpop.f32.mrf.mxu0
        %1409 = vmatprep.mubr.bf16.mxu0 0
        %1410 = vmatmul.mubr.bf16.gmra.mxu0 %v1232
        %v1411 = vpop.f32.mrf.mxu0
        %v1412 = vadd.f32 %v843, %v1411
        %v1413 = vpop.f32.mrf.mxu0
        %v1414 = vpop.f32.mrf.mxu0
        %v1415 = vadd.f32 %v846, %v1414
        %v1416 = vpop.f32.mrf.mxu0
        %1417 = vmatprep.mubr.bf16.mxu0 0
        %1418 = vmatmul.mubr.bf16.gmra.mxu0 %v1235
        %v1419 = vpop.f32.mrf.mxu0
        %v1420 = vadd.f32 %v851, %v1419
        %v1421 = vpop.f32.mrf.mxu0
        %v1422 = vpop.f32.mrf.mxu0
        %v1423 = vadd.f32 %v854, %v1422
        %v1424 = vpop.f32.mrf.mxu0
        %1425 = vmatprep.mubr.bf16.mxu0 0
        %1426 = vmatmul.mubr.bf16.gmra.mxu0 %v1238
        %v1427 = vpop.f32.mrf.mxu0
        %v1428 = vadd.f32 %v859, %v1427
        %v1429 = vpop.f32.mrf.mxu0
        %v1430 = vpop.f32.mrf.mxu0
        %v1431 = vadd.f32 %v862, %v1430
        %v1432 = vpop.f32.mrf.mxu0
        %1433 = vmatprep.mubr.bf16.mxu0 0
        %1434 = vmatmul.mubr.bf16.gmra.mxu0 %v1241
        %v1435 = vpop.f32.mrf.mxu0
        %v1436 = vadd.f32 %v867, %v1435
        %v1437 = vpop.f32.mrf.mxu0
        %v1438 = vpop.f32.mrf.mxu0
        %v1439 = vadd.f32 %v870, %v1438
        %v1440 = vpop.f32.mrf.mxu0
        %1441 = vmatprep.mubr.bf16.mxu0 0
        %1442 = vmatmul.mubr.bf16.gmra.mxu0 %v1244
        %v1443 = vpop.f32.mrf.mxu0
        %v1444 = vadd.f32 %v875, %v1443
        %v1445 = vpop.f32.mrf.mxu0
        %v1446 = vpop.f32.mrf.mxu0
        %v1447 = vadd.f32 %v878, %v1446
        %v1448 = vpop.f32.mrf.mxu0
        %1449 = vmatprep.mubr.bf16.mxu0 0
        %1450 = vmatmul.mubr.bf16.gmra.mxu0 %v1247
        %v1451 = vpop.f32.mrf.mxu0
        %v1452 = vadd.f32 %v883, %v1451
        %v1453 = vpop.f32.mrf.mxu0
        %v1454 = vpop.f32.mrf.mxu0
        %v1455 = vadd.f32 %v886, %v1454
        %v1456 = vpop.f32.mrf.mxu0
        %1457 = vmatprep.mubr.bf16.mxu0 0
        %1458 = vmatmul.mubr.bf16.gmra.mxu0 %v1250
        %v1459 = vpop.f32.mrf.mxu0
        %v1460 = vadd.f32 %v891, %v1459
        %v1461 = vpop.f32.mrf.mxu0
        %v1462 = vpop.f32.mrf.mxu0
        %v1463 = vadd.f32 %v894, %v1462
        %v1464 = vpop.f32.mrf.mxu0
        %1465 = vmatprep.mubr.bf16.mxu0 0
        %1466 = vmatmul.mubr.bf16.gmra.mxu0 %v1253
        %v1467 = vpop.f32.mrf.mxu0
        %v1468 = vadd.f32 %v899, %v1467
        %v1469 = vpop.f32.mrf.mxu0
        %v1470 = vpop.f32.mrf.mxu0
        %v1471 = vadd.f32 %v902, %v1470
        %v1472 = vpop.f32.mrf.mxu0
        %1473 = vmatprep.mubr.bf16.mxu0 0
        %1474 = vmatmul.mubr.bf16.gmra.mxu0 %v1256
        %v1475 = vpop.f32.mrf.mxu0
        %v1476 = vadd.f32 %v907, %v1475
        %v1477 = vpop.f32.mrf.mxu0
        %v1478 = vpop.f32.mrf.mxu0
        %v1479 = vadd.f32 %v910, %v1478
        %v1480 = vpop.f32.mrf.mxu0
        %1481 = vmatprep.mubr.bf16.mxu0 0
        %1482 = vmatmul.mubr.bf16.gmra.mxu0 %v1259
        %v1483 = vpop.f32.mrf.mxu0
        %v1484 = vadd.f32 %v915, %v1483
        %v1485 = vpop.f32.mrf.mxu0
        %v1486 = vpop.f32.mrf.mxu0
        %v1487 = vadd.f32 %v918, %v1486
        %v1488 = vpop.f32.mrf.mxu0
        %1489 = vmatprep.mubr.bf16.mxu0 0
        %1490 = vmatmul.mubr.bf16.gmra.mxu0 %v1262
        %v1491 = vpop.f32.mrf.mxu0
        %v1492 = vadd.f32 %v923, %v1491
        %v1493 = vpop.f32.mrf.mxu0
        %v1494 = vpop.f32.mrf.mxu0
        %v1495 = vadd.f32 %v926, %v1494
        %v1496 = vpop.f32.mrf.mxu0
        %1497 = vmatprep.mubr.bf16.mxu0 0
        %1498 = vmatmul.mubr.bf16.gmra.mxu0 %v1265
        %v1499 = vpop.f32.mrf.mxu0
        %v1500 = vadd.f32 %v931, %v1499
        %v1501 = vpop.f32.mrf.mxu0
        %v1502 = vpop.f32.mrf.mxu0
        %v1503 = vadd.f32 %v934, %v1502
        %v1504 = vpop.f32.mrf.mxu0
        %1505 = vmatprep.mubr.bf16.mxu0 0
        %1506 = vmatmul.mubr.bf16.gmra.mxu0 %v1268
        %v1507 = vpop.f32.mrf.mxu0
        %v1508 = vadd.f32 %v939, %v1507
        %v1509 = vpop.f32.mrf.mxu0
        %v1510 = vpop.f32.mrf.mxu0
        %v1511 = vadd.f32 %v942, %v1510
        %v1512 = vpop.f32.mrf.mxu0
        %1513 = vmatprep.mubr.bf16.mxu0 0
        %1514 = vmatmul.mubr.bf16.gmra.mxu0 %v1271
        %v1515 = vpop.f32.mrf.mxu0
        %v1516 = vadd.f32 %v947, %v1515
        %v1517 = vpop.f32.mrf.mxu0
        %v1518 = vpop.f32.mrf.mxu0
        %v1519 = vadd.f32 %v950, %v1518
        %v1520 = vpop.f32.mrf.mxu0
        %1521 = vmatprep.mubr.bf16.mxu0 0
        %1522 = vmatmul.mubr.bf16.gmra.mxu0 %v1274
        %v1523 = vpop.f32.mrf.mxu0
        %v1524 = vadd.f32 %v955, %v1523
        %v1525 = vpop.f32.mrf.mxu0
        %v1526 = vpop.f32.mrf.mxu0
        %v1527 = vadd.f32 %v958, %v1526
        %v1528 = vpop.f32.mrf.mxu0
        %1529 = vmatprep.mubr.bf16.mxu0 0
        %1530 = vmatmul.mubr.bf16.gmra.mxu0 %v1277
        %v1531 = vpop.f32.mrf.mxu0
        %v1532 = vadd.f32 %v963, %v1531
        %v1533 = vpop.f32.mrf.mxu0
        %v1534 = vpop.f32.mrf.mxu0
        %v1535 = vadd.f32 %v966, %v1534
        %v1536 = vpop.f32.mrf.mxu0
        %1537 = vmatprep.mubr.bf16.mxu0 0
        %1538 = vmatmul.mubr.bf16.gmra.mxu0 %v1280
        %v1539 = vpop.f32.mrf.mxu0
        %v1540 = vadd.f32 %v971, %v1539
        %v1541 = vpop.f32.mrf.mxu0
        %v1542 = vpop.f32.mrf.mxu0
        %v1543 = vadd.f32 %v974, %v1542
        %v1544 = vpop.f32.mrf.mxu0
        %1545 = vmatprep.mubr.bf16.mxu0 0
        %1546 = vmatmul.mubr.bf16.gmra.mxu0 %v1283
        %v1547 = vpop.f32.mrf.mxu0
        %v1548 = vadd.f32 %v979, %v1547
        %v1549 = vpop.f32.mrf.mxu0
        %v1550 = vpop.f32.mrf.mxu0
        %v1551 = vadd.f32 %v982, %v1550
        %v1552 = vpop.f32.mrf.mxu0
        %1553 = vmatprep.mubr.bf16.mxu0 0
        %1554 = vmatmul.mubr.bf16.gmra.mxu0 %v1286
        %v1555 = vpop.f32.mrf.mxu0
        %v1556 = vadd.f32 %v987, %v1555
        %v1557 = vpop.f32.mrf.mxu0
        %v1558 = vpop.f32.mrf.mxu0
        %v1559 = vadd.f32 %v990, %v1558
        %v1560 = vpop.f32.mrf.mxu0
        %1561 = vmatprep.mubr.bf16.mxu0 0
        %1562 = vmatmul.mubr.bf16.gmra.mxu0 %v1289
        %v1563 = vpop.f32.mrf.mxu0
        %v1564 = vadd.f32 %v995, %v1563
        %v1565 = vpop.f32.mrf.mxu0
        %v1566 = vpop.f32.mrf.mxu0
        %v1567 = vadd.f32 %v998, %v1566
        %v1568 = vpop.f32.mrf.mxu0
        %1569 = vmatprep.mubr.bf16.mxu0 0
        %1570 = vmatmul.mubr.bf16.gmra.mxu0 %v1292
        %v1571 = vpop.f32.mrf.mxu0
        %v1572 = vadd.f32 %v1003, %v1571
        %v1573 = vpop.f32.mrf.mxu0
        %v1574 = vpop.f32.mrf.mxu0
        %v1575 = vadd.f32 %v1006, %v1574
        %v1576 = vpop.f32.mrf.mxu0
        %1577 = vmatprep.mubr.bf16.mxu0 0
        %1578 = vmatmul.mubr.bf16.gmra.mxu0 %v1295
        %v1579 = vpop.f32.mrf.mxu0
        %v1580 = vadd.f32 %v1011, %v1579
        %v1581 = vpop.f32.mrf.mxu0
        %v1582 = vpop.f32.mrf.mxu0
        %v1583 = vadd.f32 %v1014, %v1582
        %v1584 = vpop.f32.mrf.mxu0
        %1585 = vdwg.mxu0
        %v1586 = vld [vmem:[%s4] sm:$0x1]
        %v1588 = vlaneseq
        %v1589 = vshrl.u32 %v1588, 7
        %v1590 = vsub.s32 0, %v1589
        %v1591 = vrot.slane %v1586, %v1590
        %v1593 = vadd.f32 %v1332, %v1591
        %v1594 = vadd.f32 %v1335, %v1591
        %v1595 = vadd.f32 %v1340, %v1591
        %v1596 = vadd.f32 %v1343, %v1591
        %v1597 = vadd.f32 %v1348, %v1591
        %v1598 = vadd.f32 %v1351, %v1591
        %v1599 = vadd.f32 %v1356, %v1591
        %v1600 = vadd.f32 %v1359, %v1591
        %v1601 = vadd.f32 %v1364, %v1591
        %v1602 = vadd.f32 %v1367, %v1591
        %v1603 = vadd.f32 %v1372, %v1591
        %v1604 = vadd.f32 %v1375, %v1591
        %v1605 = vadd.f32 %v1380, %v1591
        %v1606 = vadd.f32 %v1383, %v1591
        %v1607 = vadd.f32 %v1388, %v1591
        %v1608 = vadd.f32 %v1391, %v1591
        %v1609 = vadd.f32 %v1396, %v1591
        %v1610 = vadd.f32 %v1399, %v1591
        %v1611 = vadd.f32 %v1404, %v1591
        %v1612 = vadd.f32 %v1407, %v1591
        %v1613 = vadd.f32 %v1412, %v1591
        %v1614 = vadd.f32 %v1415, %v1591
        %v1615 = vadd.f32 %v1420, %v1591
        %v1616 = vadd.f32 %v1423, %v1591
        %v1617 = vadd.f32 %v1428, %v1591
        %v1618 = vadd.f32 %v1431, %v1591
        %v1619 = vadd.f32 %v1436, %v1591
        %v1620 = vadd.f32 %v1439, %v1591
        %v1621 = vadd.f32 %v1444, %v1591
        %v1622 = vadd.f32 %v1447, %v1591
        %v1623 = vadd.f32 %v1452, %v1591
        %v1624 = vadd.f32 %v1455, %v1591
        %v1625 = vadd.f32 %v1460, %v1591
        %v1626 = vadd.f32 %v1463, %v1591
        %v1627 = vadd.f32 %v1468, %v1591
        %v1628 = vadd.f32 %v1471, %v1591
        %v1629 = vadd.f32 %v1476, %v1591
        %v1630 = vadd.f32 %v1479, %v1591
        %v1631 = vadd.f32 %v1484, %v1591
        %v1632 = vadd.f32 %v1487, %v1591
        %v1633 = vadd.f32 %v1492, %v1591
        %v1634 = vadd.f32 %v1495, %v1591
        %v1635 = vadd.f32 %v1500, %v1591
        %v1636 = vadd.f32 %v1503, %v1591
        %v1637 = vadd.f32 %v1508, %v1591
        %v1638 = vadd.f32 %v1511, %v1591
        %v1639 = vadd.f32 %v1516, %v1591
        %v1640 = vadd.f32 %v1519, %v1591
        %v1641 = vadd.f32 %v1524, %v1591
        %v1642 = vadd.f32 %v1527, %v1591
        %v1643 = vadd.f32 %v1532, %v1591
        %v1644 = vadd.f32 %v1535, %v1591
        %v1645 = vadd.f32 %v1540, %v1591
        %v1646 = vadd.f32 %v1543, %v1591
        %v1647 = vadd.f32 %v1548, %v1591
        %v1648 = vadd.f32 %v1551, %v1591
        %v1649 = vadd.f32 %v1556, %v1591
        %v1650 = vadd.f32 %v1559, %v1591
        %v1651 = vadd.f32 %v1564, %v1591
        %v1652 = vadd.f32 %v1567, %v1591
        %v1653 = vadd.f32 %v1572, %v1591
        %v1654 = vadd.f32 %v1575, %v1591
        %v1655 = vadd.f32 %v1580, %v1591
        %v1656 = vadd.f32 %v1583, %v1591
        %v1657 = vmax.f32 %v1593, 0.0
        %v1658 = vmax.f32 %v1594, 0.0
        %v1659 = vmax.f32 %v1595, 0.0
        %v1660 = vmax.f32 %v1596, 0.0
        %v1661 = vmax.f32 %v1597, 0.0
        %v1662 = vmax.f32 %v1598, 0.0
        %v1663 = vmax.f32 %v1599, 0.0
        %v1664 = vmax.f32 %v1600, 0.0
        %v1665 = vmax.f32 %v1601, 0.0
        %v1666 = vmax.f32 %v1602, 0.0
        %v1667 = vmax.f32 %v1603, 0.0
        %v1668 = vmax.f32 %v1604, 0.0
        %v1669 = vmax.f32 %v1605, 0.0
        %v1670 = vmax.f32 %v1606, 0.0
        %v1671 = vmax.f32 %v1607, 0.0
        %v1672 = vmax.f32 %v1608, 0.0
        %v1673 = vmax.f32 %v1609, 0.0
        %v1674 = vmax.f32 %v1610, 0.0
        %v1675 = vmax.f32 %v1611, 0.0
        %v1676 = vmax.f32 %v1612, 0.0
        %v1677 = vmax.f32 %v1613, 0.0
        %v1678 = vmax.f32 %v1614, 0.0
        %v1679 = vmax.f32 %v1615, 0.0
        %v1680 = vmax.f32 %v1616, 0.0
        %v1681 = vmax.f32 %v1617, 0.0
        %v1682 = vmax.f32 %v1618, 0.0
        %v1683 = vmax.f32 %v1619, 0.0
        %v1684 = vmax.f32 %v1620, 0.0
        %v1685 = vmax.f32 %v1621, 0.0
        %v1686 = vmax.f32 %v1622, 0.0
        %v1687 = vmax.f32 %v1623, 0.0
        %v1688 = vmax.f32 %v1624, 0.0
        %v1689 = vmax.f32 %v1625, 0.0
        %v1690 = vmax.f32 %v1626, 0.0
        %v1691 = vmax.f32 %v1627, 0.0
        %v1692 = vmax.f32 %v1628, 0.0
        %v1693 = vmax.f32 %v1629, 0.0
        %v1694 = vmax.f32 %v1630, 0.0
        %v1695 = vmax.f32 %v1631, 0.0
        %v1696 = vmax.f32 %v1632, 0.0
        %v1697 = vmax.f32 %v1633, 0.0
        %v1698 = vmax.f32 %v1634, 0.0
        %v1699 = vmax.f32 %v1635, 0.0
        %v1700 = vmax.f32 %v1636, 0.0
        %v1701 = vmax.f32 %v1637, 0.0
        %v1702 = vmax.f32 %v1638, 0.0
        %v1703 = vmax.f32 %v1639, 0.0
        %v1704 = vmax.f32 %v1640, 0.0
        %v1705 = vmax.f32 %v1641, 0.0
        %v1706 = vmax.f32 %v1642, 0.0
        %v1707 = vmax.f32 %v1643, 0.0
        %v1708 = vmax.f32 %v1644, 0.0
        %v1709 = vmax.f32 %v1645, 0.0
        %v1710 = vmax.f32 %v1646, 0.0
        %v1711 = vmax.f32 %v1647, 0.0
        %v1712 = vmax.f32 %v1648, 0.0
        %v1713 = vmax.f32 %v1649, 0.0
        %v1714 = vmax.f32 %v1650, 0.0
        %v1715 = vmax.f32 %v1651, 0.0
        %v1716 = vmax.f32 %v1652, 0.0
        %v1717 = vmax.f32 %v1653, 0.0
        %v1718 = vmax.f32 %v1654, 0.0
        %v1719 = vmax.f32 %v1655, 0.0
        %v1720 = vmax.f32 %v1656, 0.0
        %v1721 = vpack.c.bf16 %v1658, %v1657
        %v1722 = vpack.c.bf16 %v1660, %v1659
        %v1723 = vpack.c.bf16 %v1662, %v1661
        %v1724 = vpack.c.bf16 %v1664, %v1663
        %v1725 = vpack.c.bf16 %v1666, %v1665
        %v1726 = vpack.c.bf16 %v1668, %v1667
        %v1727 = vpack.c.bf16 %v1670, %v1669
        %v1728 = vpack.c.bf16 %v1672, %v1671
        %v1729 = vpack.c.bf16 %v1674, %v1673
        %v1730 = vpack.c.bf16 %v1676, %v1675
        %v1731 = vpack.c.bf16 %v1678, %v1677
        %v1732 = vpack.c.bf16 %v1680, %v1679
        %v1733 = vpack.c.bf16 %v1682, %v1681
        %v1734 = vpack.c.bf16 %v1684, %v1683
        %v1735 = vpack.c.bf16 %v1686, %v1685
        %v1736 = vpack.c.bf16 %v1688, %v1687
        %v1737 = vpack.c.bf16 %v1690, %v1689
        %v1738 = vpack.c.bf16 %v1692, %v1691
        %v1739 = vpack.c.bf16 %v1694, %v1693
        %v1740 = vpack.c.bf16 %v1696, %v1695
        %v1741 = vpack.c.bf16 %v1698, %v1697
        %v1742 = vpack.c.bf16 %v1700, %v1699
        %v1743 = vpack.c.bf16 %v1702, %v1701
        %v1744 = vpack.c.bf16 %v1704, %v1703
        %v1745 = vpack.c.bf16 %v1706, %v1705
        %v1746 = vpack.c.bf16 %v1708, %v1707
        %v1747 = vpack.c.bf16 %v1710, %v1709
        %v1748 = vpack.c.bf16 %v1712, %v1711
        %v1749 = vpack.c.bf16 %v1714, %v1713
        %v1750 = vpack.c.bf16 %v1716, %v1715
        %v1751 = vpack.c.bf16 %v1718, %v1717
        %v1752 = vpack.c.bf16 %v1720, %v1719
        %v1753 = vld [vmem:[%s5] sm:$0xf]
        %v1754 = vld [vmem:[%s5 + $0x4] sm:$0xf]
        %v1755 = vld [vmem:[%s5 + $0x8] sm:$0xf]
        %v1756 = vld [vmem:[%s5 + $0xc] sm:$0xf]
        %v1757 = vld [vmem:[%s6] sm:$0x1]
        %v1759 = vlaneseq
        %v1760 = vshrl.u32 %v1759, 7
        %v1761 = vsub.s32 0, %v1760
        %v1762 = vrot.slane %v1757, %v1761
        %v1768 = vunpack.c.l.b16 %v1753
        %v1769 = vunpack.c.l.b16 %v1754
        %v1770 = vunpack.c.l.b16 %v1755
        %v1771 = vunpack.c.l.b16 %v1756
        %v1772 = vpack.c.b16 %v1769, %v1768
        %v1773 = vpack.c.b16 %v1771, %v1770
        %vm1776 = vcmask 261120
        %v1778 = vsel %vm1776, %v1721, 0
        %v1781 = vsel %vm1776, %v1722, 0
        %v1784 = vsel %vm1776, %v1723, 0
        %v1787 = vsel %vm1776, %v1724, 0
        %v1790 = vsel %vm1776, %v1725, 0
        %v1793 = vsel %vm1776, %v1726, 0
        %v1796 = vsel %vm1776, %v1727, 0
        %v1799 = vsel %vm1776, %v1728, 0
        %v1802 = vsel %vm1776, %v1729, 0
        %v1805 = vsel %vm1776, %v1730, 0
        %v1808 = vsel %vm1776, %v1731, 0
        %v1811 = vsel %vm1776, %v1732, 0
        %v1814 = vsel %vm1776, %v1733, 0
        %v1817 = vsel %vm1776, %v1734, 0
        %v1820 = vsel %vm1776, %v1735, 0
        %v1823 = vsel %vm1776, %v1736, 0
        %v1826 = vsel %vm1776, %v1737, 0
        %v1829 = vsel %vm1776, %v1738, 0
        %v1832 = vsel %vm1776, %v1739, 0
        %v1835 = vsel %vm1776, %v1740, 0
        %v1838 = vsel %vm1776, %v1741, 0
        %v1841 = vsel %vm1776, %v1742, 0
        %v1844 = vsel %vm1776, %v1743, 0
        %v1847 = vsel %vm1776, %v1744, 0
        %v1850 = vsel %vm1776, %v1745, 0
        %v1853 = vsel %vm1776, %v1746, 0
        %v1856 = vsel %vm1776, %v1747, 0
        %v1859 = vsel %vm1776, %v1748, 0
        %v1862 = vsel %vm1776, %v1749, 0
        %v1865 = vsel %vm1776, %v1750, 0
        %v1868 = vsel %vm1776, %v1751, 0
        %v1871 = vsel %vm1776, %v1752, 0
        %1873 = vmatprep.subr.bf16.mxu0 0
        %1874 = vmatpush1.bf16.msra.mxu0 0
        %1875 = vmatprep.subr.bf16.mxu0 0
        %1876 = vmatpush1.bf16.msra.mxu0 0
        %1877 = vmatprep.subr.bf16.mxu0 0
        %1878 = vmatpush1.bf16.msra.mxu0 0
        %1879 = vmatprep.subr.bf16.mxu0 0
        %1880 = vmatpush1.bf16.msra.mxu0 0
        %1881 = vmatprep.subr.bf16.mxu0 0
        %1882 = vmatpush1.bf16.msra.mxu0 0
        %1883 = vmatprep.subr.bf16.mxu0 0
        %1884 = vmatpush1.bf16.msra.mxu0 0
        %1885 = vmatprep.subr.bf16.mxu0 0
        %1886 = vmatpush1.bf16.msra.mxu0 %v1773
        %1887 = vmatprep.subr.bf16.mxu0 0
        %1888 = vmatpush1.bf16.msra.mxu0 %v1772
        %1889 = vmatprep.subr.bf16.mxu0 0
        %1890 = vmatpush2.bf16.msra.mxu0 0
        %1891 = vmatprep.subr.bf16.mxu0 0
        %1892 = vmatpush2.bf16.msra.mxu0 0
        %1893 = vmatprep.subr.bf16.mxu0 0
        %1894 = vmatpush2.bf16.msra.mxu0 0
        %1895 = vmatprep.subr.bf16.mxu0 0
        %1896 = vmatpush2.bf16.msra.mxu0 0
        %1897 = vmatprep.subr.bf16.mxu0 0
        %1898 = vmatpush2.bf16.msra.mxu0 0
        %1899 = vmatprep.subr.bf16.mxu0 0
        %1900 = vmatpush2.bf16.msra.mxu0 0
        %1901 = vmatprep.subr.bf16.mxu0 0
        %1902 = vmatpush2.bf16.msra.mxu0 0
        %1903 = vmatprep.subr.bf16.mxu0 0
        %1904 = vmatpush2.bf16.msra.mxu0 0
        %1905 = vmatprep.mubr.bf16.mxu0 0
        %1906 = vmatmul.mubr.bf16.gmra.mxu0 %v1778
        %v1907 = vpop.f32.mrf.mxu0
        %v1908 = vadd.f32 %v1762, %v1907
        %v1909 = vpop.f32.mrf.mxu0
        %v1910 = vpop.f32.mrf.mxu0
        %v1911 = vadd.f32 %v1762, %v1910
        %v1912 = vpop.f32.mrf.mxu0
        %1913 = vmatprep.mubr.bf16.mxu0 0
        %1914 = vmatmul.mubr.bf16.gmra.mxu0 %v1781
        %v1915 = vpop.f32.mrf.mxu0
        %v1916 = vadd.f32 %v1762, %v1915
        %v1917 = vpop.f32.mrf.mxu0
        %v1918 = vpop.f32.mrf.mxu0
        %v1919 = vadd.f32 %v1762, %v1918
        %v1920 = vpop.f32.mrf.mxu0
        %1921 = vmatprep.mubr.bf16.mxu0 0
        %1922 = vmatmul.mubr.bf16.gmra.mxu0 %v1784
        %v1923 = vpop.f32.mrf.mxu0
        %v1924 = vadd.f32 %v1762, %v1923
        %v1925 = vpop.f32.mrf.mxu0
        %v1926 = vpop.f32.mrf.mxu0
        %v1927 = vadd.f32 %v1762, %v1926
        %v1928 = vpop.f32.mrf.mxu0
        %1929 = vmatprep.mubr.bf16.mxu0 0
        %1930 = vmatmul.mubr.bf16.gmra.mxu0 %v1787
        %v1931 = vpop.f32.mrf.mxu0
        %v1932 = vadd.f32 %v1762, %v1931
        %v1933 = vpop.f32.mrf.mxu0
        %v1934 = vpop.f32.mrf.mxu0
        %v1935 = vadd.f32 %v1762, %v1934
        %v1936 = vpop.f32.mrf.mxu0
        %1937 = vmatprep.mubr.bf16.mxu0 0
        %1938 = vmatmul.mubr.bf16.gmra.mxu0 %v1790
        %v1939 = vpop.f32.mrf.mxu0
        %v1940 = vadd.f32 %v1762, %v1939
        %v1941 = vpop.f32.mrf.mxu0
        %v1942 = vpop.f32.mrf.mxu0
        %v1943 = vadd.f32 %v1762, %v1942
        %v1944 = vpop.f32.mrf.mxu0
        %1945 = vmatprep.mubr.bf16.mxu0 0
        %1946 = vmatmul.mubr.bf16.gmra.mxu0 %v1793
        %v1947 = vpop.f32.mrf.mxu0
        %v1948 = vadd.f32 %v1762, %v1947
        %v1949 = vpop.f32.mrf.mxu0
        %v1950 = vpop.f32.mrf.mxu0
        %v1951 = vadd.f32 %v1762, %v1950
        %v1952 = vpop.f32.mrf.mxu0
        %1953 = vmatprep.mubr.bf16.mxu0 0
        %1954 = vmatmul.mubr.bf16.gmra.mxu0 %v1796
        %v1955 = vpop.f32.mrf.mxu0
        %v1956 = vadd.f32 %v1762, %v1955
        %v1957 = vpop.f32.mrf.mxu0
        %v1958 = vpop.f32.mrf.mxu0
        %v1959 = vadd.f32 %v1762, %v1958
        %v1960 = vpop.f32.mrf.mxu0
        %1961 = vmatprep.mubr.bf16.mxu0 0
        %1962 = vmatmul.mubr.bf16.gmra.mxu0 %v1799
        %v1963 = vpop.f32.mrf.mxu0
        %v1964 = vadd.f32 %v1762, %v1963
        %v1965 = vpop.f32.mrf.mxu0
        %v1966 = vpop.f32.mrf.mxu0
        %v1967 = vadd.f32 %v1762, %v1966
        %v1968 = vpop.f32.mrf.mxu0
        %1969 = vmatprep.mubr.bf16.mxu0 0
        %1970 = vmatmul.mubr.bf16.gmra.mxu0 %v1802
        %v1971 = vpop.f32.mrf.mxu0
        %v1972 = vadd.f32 %v1762, %v1971
        %v1973 = vpop.f32.mrf.mxu0
        %v1974 = vpop.f32.mrf.mxu0
        %v1975 = vadd.f32 %v1762, %v1974
        %v1976 = vpop.f32.mrf.mxu0
        %1977 = vmatprep.mubr.bf16.mxu0 0
        %1978 = vmatmul.mubr.bf16.gmra.mxu0 %v1805
        %v1979 = vpop.f32.mrf.mxu0
        %v1980 = vadd.f32 %v1762, %v1979
        %v1981 = vpop.f32.mrf.mxu0
        %v1982 = vpop.f32.mrf.mxu0
        %v1983 = vadd.f32 %v1762, %v1982
        %v1984 = vpop.f32.mrf.mxu0
        %1985 = vmatprep.mubr.bf16.mxu0 0
        %1986 = vmatmul.mubr.bf16.gmra.mxu0 %v1808
        %v1987 = vpop.f32.mrf.mxu0
        %v1988 = vadd.f32 %v1762, %v1987
        %v1989 = vpop.f32.mrf.mxu0
        %v1990 = vpop.f32.mrf.mxu0
        %v1991 = vadd.f32 %v1762, %v1990
        %v1992 = vpop.f32.mrf.mxu0
        %1993 = vmatprep.mubr.bf16.mxu0 0
        %1994 = vmatmul.mubr.bf16.gmra.mxu0 %v1811
        %v1995 = vpop.f32.mrf.mxu0
        %v1996 = vadd.f32 %v1762, %v1995
        %v1997 = vpop.f32.mrf.mxu0
        %v1998 = vpop.f32.mrf.mxu0
        %v1999 = vadd.f32 %v1762, %v1998
        %v2000 = vpop.f32.mrf.mxu0
        %2001 = vmatprep.mubr.bf16.mxu0 0
        %2002 = vmatmul.mubr.bf16.gmra.mxu0 %v1814
        %v2003 = vpop.f32.mrf.mxu0
        %v2004 = vadd.f32 %v1762, %v2003
        %v2005 = vpop.f32.mrf.mxu0
        %v2006 = vpop.f32.mrf.mxu0
        %v2007 = vadd.f32 %v1762, %v2006
        %v2008 = vpop.f32.mrf.mxu0
        %2009 = vmatprep.mubr.bf16.mxu0 0
        %2010 = vmatmul.mubr.bf16.gmra.mxu0 %v1817
        %v2011 = vpop.f32.mrf.mxu0
        %v2012 = vadd.f32 %v1762, %v2011
        %v2013 = vpop.f32.mrf.mxu0
        %v2014 = vpop.f32.mrf.mxu0
        %v2015 = vadd.f32 %v1762, %v2014
        %v2016 = vpop.f32.mrf.mxu0
        %2017 = vmatprep.mubr.bf16.mxu0 0
        %2018 = vmatmul.mubr.bf16.gmra.mxu0 %v1820
        %v2019 = vpop.f32.mrf.mxu0
        %v2020 = vadd.f32 %v1762, %v2019
        %v2021 = vpop.f32.mrf.mxu0
        %v2022 = vpop.f32.mrf.mxu0
        %v2023 = vadd.f32 %v1762, %v2022
        %v2024 = vpop.f32.mrf.mxu0
        %2025 = vmatprep.mubr.bf16.mxu0 0
        %2026 = vmatmul.mubr.bf16.gmra.mxu0 %v1823
        %v2027 = vpop.f32.mrf.mxu0
        %v2028 = vadd.f32 %v1762, %v2027
        %v2029 = vpop.f32.mrf.mxu0
        %v2030 = vpop.f32.mrf.mxu0
        %v2031 = vadd.f32 %v1762, %v2030
        %v2032 = vpop.f32.mrf.mxu0
        %2033 = vmatprep.mubr.bf16.mxu0 0
        %2034 = vmatmul.mubr.bf16.gmra.mxu0 %v1826
        %v2035 = vpop.f32.mrf.mxu0
        %v2036 = vadd.f32 %v1762, %v2035
        %v2037 = vpop.f32.mrf.mxu0
        %v2038 = vpop.f32.mrf.mxu0
        %v2039 = vadd.f32 %v1762, %v2038
        %v2040 = vpop.f32.mrf.mxu0
        %2041 = vmatprep.mubr.bf16.mxu0 0
        %2042 = vmatmul.mubr.bf16.gmra.mxu0 %v1829
        %v2043 = vpop.f32.mrf.mxu0
        %v2044 = vadd.f32 %v1762, %v2043
        %v2045 = vpop.f32.mrf.mxu0
        %v2046 = vpop.f32.mrf.mxu0
        %v2047 = vadd.f32 %v1762, %v2046
        %v2048 = vpop.f32.mrf.mxu0
        %2049 = vmatprep.mubr.bf16.mxu0 0
        %2050 = vmatmul.mubr.bf16.gmra.mxu0 %v1832
        %v2051 = vpop.f32.mrf.mxu0
        %v2052 = vadd.f32 %v1762, %v2051
        %v2053 = vpop.f32.mrf.mxu0
        %v2054 = vpop.f32.mrf.mxu0
        %v2055 = vadd.f32 %v1762, %v2054
        %v2056 = vpop.f32.mrf.mxu0
        %2057 = vmatprep.mubr.bf16.mxu0 0
        %2058 = vmatmul.mubr.bf16.gmra.mxu0 %v1835
        %v2059 = vpop.f32.mrf.mxu0
        %v2060 = vadd.f32 %v1762, %v2059
        %v2061 = vpop.f32.mrf.mxu0
        %v2062 = vpop.f32.mrf.mxu0
        %v2063 = vadd.f32 %v1762, %v2062
        %v2064 = vpop.f32.mrf.mxu0
        %2065 = vmatprep.mubr.bf16.mxu0 0
        %2066 = vmatmul.mubr.bf16.gmra.mxu0 %v1838
        %v2067 = vpop.f32.mrf.mxu0
        %v2068 = vadd.f32 %v1762, %v2067
        %v2069 = vpop.f32.mrf.mxu0
        %v2070 = vpop.f32.mrf.mxu0
        %v2071 = vadd.f32 %v1762, %v2070
        %v2072 = vpop.f32.mrf.mxu0
        %2073 = vmatprep.mubr.bf16.mxu0 0
        %2074 = vmatmul.mubr.bf16.gmra.mxu0 %v1841
        %v2075 = vpop.f32.mrf.mxu0
        %v2076 = vadd.f32 %v1762, %v2075
        %v2077 = vpop.f32.mrf.mxu0
        %v2078 = vpop.f32.mrf.mxu0
        %v2079 = vadd.f32 %v1762, %v2078
        %v2080 = vpop.f32.mrf.mxu0
        %2081 = vmatprep.mubr.bf16.mxu0 0
        %2082 = vmatmul.mubr.bf16.gmra.mxu0 %v1844
        %v2083 = vpop.f32.mrf.mxu0
        %v2084 = vadd.f32 %v1762, %v2083
        %v2085 = vpop.f32.mrf.mxu0
        %v2086 = vpop.f32.mrf.mxu0
        %v2087 = vadd.f32 %v1762, %v2086
        %v2088 = vpop.f32.mrf.mxu0
        %2089 = vmatprep.mubr.bf16.mxu0 0
        %2090 = vmatmul.mubr.bf16.gmra.mxu0 %v1847
        %v2091 = vpop.f32.mrf.mxu0
        %v2092 = vadd.f32 %v1762, %v2091
        %v2093 = vpop.f32.mrf.mxu0
        %v2094 = vpop.f32.mrf.mxu0
        %v2095 = vadd.f32 %v1762, %v2094
        %v2096 = vpop.f32.mrf.mxu0
        %2097 = vmatprep.mubr.bf16.mxu0 0
        %2098 = vmatmul.mubr.bf16.gmra.mxu0 %v1850
        %v2099 = vpop.f32.mrf.mxu0
        %v2100 = vadd.f32 %v1762, %v2099
        %v2101 = vpop.f32.mrf.mxu0
        %v2102 = vpop.f32.mrf.mxu0
        %v2103 = vadd.f32 %v1762, %v2102
        %v2104 = vpop.f32.mrf.mxu0
        %2105 = vmatprep.mubr.bf16.mxu0 0
        %2106 = vmatmul.mubr.bf16.gmra.mxu0 %v1853
        %v2107 = vpop.f32.mrf.mxu0
        %v2108 = vadd.f32 %v1762, %v2107
        %v2109 = vpop.f32.mrf.mxu0
        %v2110 = vpop.f32.mrf.mxu0
        %v2111 = vadd.f32 %v1762, %v2110
        %v2112 = vpop.f32.mrf.mxu0
        %2113 = vmatprep.mubr.bf16.mxu0 0
        %2114 = vmatmul.mubr.bf16.gmra.mxu0 %v1856
        %v2115 = vpop.f32.mrf.mxu0
        %v2116 = vadd.f32 %v1762, %v2115
        %v2117 = vpop.f32.mrf.mxu0
        %v2118 = vpop.f32.mrf.mxu0
        %v2119 = vadd.f32 %v1762, %v2118
        %v2120 = vpop.f32.mrf.mxu0
        %2121 = vmatprep.mubr.bf16.mxu0 0
        %2122 = vmatmul.mubr.bf16.gmra.mxu0 %v1859
        %v2123 = vpop.f32.mrf.mxu0
        %v2124 = vadd.f32 %v1762, %v2123
        %v2125 = vpop.f32.mrf.mxu0
        %v2126 = vpop.f32.mrf.mxu0
        %v2127 = vadd.f32 %v1762, %v2126
        %v2128 = vpop.f32.mrf.mxu0
        %2129 = vmatprep.mubr.bf16.mxu0 0
        %2130 = vmatmul.mubr.bf16.gmra.mxu0 %v1862
        %v2131 = vpop.f32.mrf.mxu0
        %v2132 = vadd.f32 %v1762, %v2131
        %v2133 = vpop.f32.mrf.mxu0
        %v2134 = vpop.f32.mrf.mxu0
        %v2135 = vadd.f32 %v1762, %v2134
        %v2136 = vpop.f32.mrf.mxu0
        %2137 = vmatprep.mubr.bf16.mxu0 0
        %2138 = vmatmul.mubr.bf16.gmra.mxu0 %v1865
        %v2139 = vpop.f32.mrf.mxu0
        %v2140 = vadd.f32 %v1762, %v2139
        %v2141 = vpop.f32.mrf.mxu0
        %v2142 = vpop.f32.mrf.mxu0
        %v2143 = vadd.f32 %v1762, %v2142
        %v2144 = vpop.f32.mrf.mxu0
        %2145 = vmatprep.mubr.bf16.mxu0 0
        %2146 = vmatmul.mubr.bf16.gmra.mxu0 %v1868
        %v2147 = vpop.f32.mrf.mxu0
        %v2148 = vadd.f32 %v1762, %v2147
        %v2149 = vpop.f32.mrf.mxu0
        %v2150 = vpop.f32.mrf.mxu0
        %v2151 = vadd.f32 %v1762, %v2150
        %v2152 = vpop.f32.mrf.mxu0
        %2153 = vmatprep.mubr.bf16.mxu0 0
        %2154 = vmatmul.mubr.bf16.gmra.mxu0 %v1871
        %v2155 = vpop.f32.mrf.mxu0
        %v2156 = vadd.f32 %v1762, %v2155
        %v2157 = vpop.f32.mrf.mxu0
        %v2158 = vpop.f32.mrf.mxu0
        %v2159 = vadd.f32 %v1762, %v2158
        %v2160 = vpop.f32.mrf.mxu0
        %2161 = vdwg.mxu0
        %2162 = vst [vmem:[%s288] sm:$0xff] %v1908
        %2163 = vst [vmem:[%s288 + $0x8] sm:$0xff] %v1911
        %2164 = vst [vmem:[%s288 + $0x10] sm:$0xff] %v1916
        %2165 = vst [vmem:[%s288 + $0x18] sm:$0xff] %v1919
        %2166 = vst [vmem:[%s288 + $0x20] sm:$0xff] %v1924
        %2167 = vst [vmem:[%s288 + $0x28] sm:$0xff] %v1927
        %2168 = vst [vmem:[%s288 + $0x30] sm:$0xff] %v1932
        %2169 = vst [vmem:[%s288 + $0x38] sm:$0xff] %v1935
        %2170 = vst [vmem:[%s288 + $0x40] sm:$0xff] %v1940
        %2171 = vst [vmem:[%s288 + $0x48] sm:$0xff] %v1943
        %2172 = vst [vmem:[%s288 + $0x50] sm:$0xff] %v1948
        %2173 = vst [vmem:[%s288 + $0x58] sm:$0xff] %v1951
        %2174 = vst [vmem:[%s288 + $0x60] sm:$0xff] %v1956
        %2175 = vst [vmem:[%s288 + $0x68] sm:$0xff] %v1959
        %2176 = vst [vmem:[%s288 + $0x70] sm:$0xff] %v1964
        %2177 = vst [vmem:[%s288 + $0x78] sm:$0xff] %v1967
        %2178 = vst [vmem:[%s288 + $0x80] sm:$0xff] %v1972
        %2179 = vst [vmem:[%s288 + $0x88] sm:$0xff] %v1975
        %2180 = vst [vmem:[%s288 + $0x90] sm:$0xff] %v1980
        %2181 = vst [vmem:[%s288 + $0x98] sm:$0xff] %v1983
        %2182 = vst [vmem:[%s288 + $0xa0] sm:$0xff] %v1988
        %2183 = vst [vmem:[%s288 + $0xa8] sm:$0xff] %v1991
        %2184 = vst [vmem:[%s288 + $0xb0] sm:$0xff] %v1996
        %2185 = vst [vmem:[%s288 + $0xb8] sm:$0xff] %v1999
        %2186 = vst [vmem:[%s288 + $0xc0] sm:$0xff] %v2004
        %2187 = vst [vmem:[%s288 + $0xc8] sm:$0xff] %v2007
        %2188 = vst [vmem:[%s288 + $0xd0] sm:$0xff] %v2012
        %2189 = vst [vmem:[%s288 + $0xd8] sm:$0xff] %v2015
        %2190 = vst [vmem:[%s288 + $0xe0] sm:$0xff] %v2020
        %2191 = vst [vmem:[%s288 + $0xe8] sm:$0xff] %v2023
        %2192 = vst [vmem:[%s288 + $0xf0] sm:$0xff] %v2028
        %2193 = vst [vmem:[%s288 + $0xf8] sm:$0xff] %v2031
        %2194 = vst [vmem:[%s288 + $0x100] sm:$0xff] %v2036
        %2195 = vst [vmem:[%s288 + $0x108] sm:$0xff] %v2039
        %2196 = vst [vmem:[%s288 + $0x110] sm:$0xff] %v2044
        %2197 = vst [vmem:[%s288 + $0x118] sm:$0xff] %v2047
        %2198 = vst [vmem:[%s288 + $0x120] sm:$0xff] %v2052
        %2199 = vst [vmem:[%s288 + $0x128] sm:$0xff] %v2055
        %2200 = vst [vmem:[%s288 + $0x130] sm:$0xff] %v2060
        %2201 = vst [vmem:[%s288 + $0x138] sm:$0xff] %v2063
        %2202 = vst [vmem:[%s288 + $0x140] sm:$0xff] %v2068
        %2203 = vst [vmem:[%s288 + $0x148] sm:$0xff] %v2071
        %2204 = vst [vmem:[%s288 + $0x150] sm:$0xff] %v2076
        %2205 = vst [vmem:[%s288 + $0x158] sm:$0xff] %v2079
        %2206 = vst [vmem:[%s288 + $0x160] sm:$0xff] %v2084
        %2207 = vst [vmem:[%s288 + $0x168] sm:$0xff] %v2087
        %2208 = vst [vmem:[%s288 + $0x170] sm:$0xff] %v2092
        %2209 = vst [vmem:[%s288 + $0x178] sm:$0xff] %v2095
        %2210 = vst [vmem:[%s288 + $0x180] sm:$0xff] %v2100
        %2211 = vst [vmem:[%s288 + $0x188] sm:$0xff] %v2103
        %2212 = vst [vmem:[%s288 + $0x190] sm:$0xff] %v2108
        %2213 = vst [vmem:[%s288 + $0x198] sm:$0xff] %v2111
        %2214 = vst [vmem:[%s288 + $0x1a0] sm:$0xff] %v2116
        %2215 = vst [vmem:[%s288 + $0x1a8] sm:$0xff] %v2119
        %2216 = vst [vmem:[%s288 + $0x1b0] sm:$0xff] %v2124
        %2217 = vst [vmem:[%s288 + $0x1b8] sm:$0xff] %v2127
        %2218 = vst [vmem:[%s288 + $0x1c0] sm:$0xff] %v2132
        %2219 = vst [vmem:[%s288 + $0x1c8] sm:$0xff] %v2135
        %2220 = vst [vmem:[%s288 + $0x1d0] sm:$0xff] %v2140
        %2221 = vst [vmem:[%s288 + $0x1d8] sm:$0xff] %v2143
        %2222 = vst [vmem:[%s288 + $0x1e0] sm:$0xff] %v2148
        %2223 = vst [vmem:[%s288 + $0x1e8] sm:$0xff] %v2151
        %2224 = vst [vmem:[%s288 + $0x1f0] sm:$0xff] %v2156
        %2225 = vst [vmem:[%s288 + $0x1f8] sm:$0xff] %v2159
        %s2226 = sand.u32 %s186, 1
        %s2227 = scalar_lea.sflag [#allocation3], %s2226
        %s2228 = sand.u32 %s186, 1
        %s2229 = smul.addr %s2228, 512
        %s2230 = scalar_lea.vmem [#allocation2], %s2229
        // Predicated region
        $region49: #{tpu_custom_call.1} parent=47 // pred_check
          %p2231 = pneg %p196
        $region50: #{tpu_custom_call.1} parent=47 // pred_check_branch
          %2233 = sbr.rel (%p2231) target = $region52
        $region51: #{tpu_custom_call.1} parent=47 // pred_region
          %s2234 = smul.u32 64, %s21
          %s2236 = ssub.s32 8192, 8192
          %2237 = vsyncadd %s2227, %s2236
          %s2238 = smul.addr %s2234, 128
          %s2239 = scalar_lea.hbm %s7, %s2238
          %s2240 = sshll.u32 %s2230, 4
          %s2241 = int_to_ptr.vmem [resolvable:$true] %s2240
          %2246 = dma.vmem_to_hbm [thread:$0]  %s2241, 8192, %s2239, %s2227, 128, 128, 8
        $region52: #{tpu_custom_call.1} parent=47 // pred_fallthru
          _
      $region48: #{tpu_custom_call.1} parent=5 // pred_fallthru
        _
      %p2247 = scmp.le.s32.totalorder 2, %s16
      // Predicated region
      $region53: #{tpu_custom_call.1} parent=5 // pred_check
        %p2248 = pneg %p2247
      $region54: #{tpu_custom_call.1} parent=5 // pred_check_branch
        %2250 = sbr.rel (%p2248) target = $region56
      $region55: #{tpu_custom_call.1} parent=5 // pred_region
        %s2251 = ssub.s32 %s16, 2
        // Predicated region
        $region57: #{tpu_custom_call.1} parent=55 // pred_check
          %p2252 = pneg %p202
        $region58: #{tpu_custom_call.1} parent=55 // pred_check_branch
          %2254 = sbr.rel (%p2252) target = $region60
        $region59: #{tpu_custom_call.1} parent=55 // pred_region
          %s2255 = sand.u32 %s187, 1
          %s2256 = scalar_lea.sflag [#allocation3], %s2255
          %s2257 = sand.u32 %s187, 1
          %s2258 = smul.addr %s2257, 512
          %s2259 = scalar_lea.vmem [#allocation2], %s2258
          %2260 = dma.done %s2256, 8192
        $region60: #{tpu_custom_call.1} parent=55 // pred_fallthru
          _
      $region56: #{tpu_custom_call.1} parent=5 // pred_fallthru
        _
    $region6: #{tpu_custom_call.1} parent=1 // loop_footer
      %s20 = sadd.s32 1, %s16
    $region7: #{tpu_custom_call.1} parent=1 // loop_footer_branch
      %15 = sbr.rel target = $region3
    $region8: #{tpu_custom_call.1} parent=1 // loop_exit
      _
    %2261 = vsyncpa [#allocation3], 1
    %s2262 = scalar_lea.sflag [#allocation3], 1
    %2263 = vsyncpa %s2262, 1

</llo_original>
